<compile_context>
chip_gen: v6e
topology: v6e:2x2x1
jax: 0.10.0
libtpu: 0.0.40
codegen_flags: <defaults>
</compile_context>

<pallas_src>
import numpy as np
import jax
import jax.numpy as jnp
from jax import lax
from jax.experimental import pallas as pl
from jax.experimental.pallas import tpu as pltpu


# ----------------------------------------------------------------------------- wrapper
def eegnet_pallas(x, p, *, n_spectral, n_pointwise, n_spatial, n_channels, size_output):
    B, one, C, T = x.shape
    assert one == 1 and C == n_channels
    assert T % 64 == 0 and T > 64, "size_input must be >64 and divisible by 64 here"
    F1, D, F2, Kout = n_spectral, n_pointwise, n_spatial, size_output
    O = D * F1
    K1, K2 = 128, 16
    CK = C * K1
    T8 = T // 8
    W2 = T // 64
    eps = 1e-3

    # ---- batch tiling: whole batch in one grid step when small (v5e/v6e-friendly);
    #      8-per-step tiles otherwise (>=2 steps keeps both v7x TCs busy for large B).
    BT = B if B <= 8 else 8
    Bpad = ((B + BT - 1) // BT) * BT
    grid = (Bpad // BT,)

    # ---- BatchNorm folding (inference) ----
    def bn_affine(bn):
        s = bn['gamma'] / jnp.sqrt(bn['var'] + eps)
        return s, bn['beta'] - bn['mean'] * s

    a1, s1 = bn_affine(p['bn1'])              # (F1,)
    a2, s2 = bn_affine(p['bn2'])              # (O,)
    a3, s3 = bn_affine(p['bn3'])              # (F2,)
    group = jnp.arange(O) // D                # depthwise output channel -> spectral group
    alpha1 = a2 * a1[group]                                        # (O,)
    beta1 = a2 * (s1[group] * jnp.sum(p['w2'], axis=1)) + s2       # (O,)

    # ---- block 1: fold temporal(128) + spatial(C) convs + BN scales into one weight ----
    w1g = p['w1'][group, :]                                        # (O, K1)
    wfold = (alpha1[:, None, None] * p['w2'][:, :, None] * w1g[:, None, :])
    wfold = wfold.reshape(O, CK).astype(jnp.bfloat16)              # (O, C*K1), bf16 for MXU

    # ---- block 2: AvgPool(1,8) + ZeroPad2d((7,8)) + depthwise Conv(1,16) folded ----
    padl2 = (K2 - 1) // 2
    pool_core = (jnp.arange(T)[:, None] // 8 ==
                 jnp.arange(T8)[None, :]).astype(jnp.float32) / 8.0          # (T, T8)
    pool1p = jnp.zeros((T, T8 + K2 - 1), jnp.float32)
    pool1p = pool1p.at[:, padl2:padl2 + T8].set(pool_core)                   # (T, T8+15)
    win = pool1p[:, jnp.arange(T8)[:, None] + jnp.arange(K2)[None, :]]       # (T, T8, K2)
    pcombT = jnp.einsum('ok,tsk->ost', p['w3'], win)                         # (O, T8, T)

    # ---- pointwise conv + b3 + BN3 folded ----
    w4a3 = a3[:, None] * p['w4']                                             # (F2, O)
    caff = a3 * (p['w4'] @ p['b3']) + s3                                     # (F2,)

    # ---- AvgPool(1,8) #2 + Flatten(channel-major) + Linear folded ----
    wlin3 = p['wlin'].reshape(Kout, F2, W2)
    wflatT = (wlin3[:, :, jnp.arange(T8) // 8] / 8.0).reshape(Kout, F2 * T8)  # (Kout, F2*T8)

    # ---- pack tiny constants into one lane-dense 2-D array (single DMA / VMEM tile) ----
    nrows = max(O, F2, 1)
    ncols = 2 + O + Kout
    smallc = jnp.zeros((nrows, ncols), jnp.float32)
    smallc = smallc.at[:O, 0].set(beta1)
    smallc = smallc.at[:F2, 1:1 + O].set(w4a3)
    smallc = smallc.at[:F2, 1 + O].set(caff)
    smallc = smallc.at[0, 2 + O:2 + O + Kout].set(p['blin'])

    # ---- input prep: ReflectionPad2d((63,64,0,0)) + im2col, lane-dense over (batch,time) ----
    padl1 = (K1 - 1) // 2
    padr1 = (K1 - 1) - padl1
    xb = jnp.pad(x[:, 0].astype(jnp.float32), ((0, Bpad - B), (0, 0), (0, 0)))     # (Bpad,C,T)
    xr = jnp.pad(xb, ((0, 0), (0, 0), (padl1, padr1)), mode='reflect')             # (Bpad,C,Tp)
    widx = jnp.arange(K1)[:, None] + jnp.arange(T)[None, :]                        # (K1, T)
    xcol = xr[:, :, widx]                                                          # (Bpad,C,K1,T)
    xcol = jnp.transpose(xcol, (1, 2, 0, 3)).reshape(CK, Bpad * T).astype(jnp.bfloat16)

    # ------------------------------------------------------------------------- kernel
    nt = (((1,), (1,)), ((), ()))           # "NT" dot: contract last dims of both operands

    def elu(h):
        return jnp.where(h > 0.0, h, jnp.exp(jnp.minimum(h, 0.0)) - 1.0)

    def kernel(xcol_ref, wfold_ref, pcombT_ref, wflatT_ref, smallc_ref, out_ref):
        beta1v = smallc_ref[0:O, 0:1]                        # (O, 1)
        w4a3v = smallc_ref[0:F2, 1:1 + O]                    # (F2, O)
        caffv = smallc_ref[0:F2, 1 + O:2 + O]                # (F2, 1)
        bfcv = smallc_ref[0:1, 2 + O:2 + O + Kout]           # (1, Kout)

        # ---- block 1: one MXU matmul over the im2col slab (all BT batches on lanes) ----
        acc = jnp.dot(wfold_ref[...], xcol_ref[...],
                      preferred_element_type=jnp.float32)    # (O, BT*T)
        h = elu(acc + beta1v)

        rows_out = []
        for b in range(BT):                                  # per-batch tail (tiny)
            h_b = h[:, b * T:(b + 1) * T]                    # (O, T) vreg-aligned slice
            # block 2: pool+pad+depthwise conv folded into pcombT -> O small MXU dots
            acc2 = jnp.concatenate(
                [lax.dot_general(h_b[o:o + 1, :], pcombT_ref[o], nt,
                                 preferred_element_type=jnp.float32)
                 for o in range(O)], axis=0)                 # (O, T8)
            # pointwise conv + (b3, BN3) folded -> ELU
            y4 = elu(jnp.dot(w4a3v, acc2, preferred_element_type=jnp.float32) + caffv)
            # AvgPool(1,8) #2 + Flatten + Linear folded into wflatT
            ob = bfcv
            for f in range(F2):
                ob = ob + lax.dot_general(
                    y4[f:f + 1, :], wflatT_ref[0:Kout, f * T8:(f + 1) * T8], nt,
                    preferred_element_type=jnp.float32)      # (1, Kout)
            rows_out.append(ob)
        out_ref[...] = jnp.concatenate(rows_out, axis=0)     # (BT, Kout), single store

    def const_spec(shape):
        return pl.BlockSpec(shape, lambda g: (0,) * len(shape))

    grid_spec = pltpu.PrefetchScalarGridSpec(
        num_scalar_prefetch=0,
        grid=grid,
        in_specs=[
            pl.BlockSpec((CK, BT * T), lambda g: (0, g)),    # im2col slab, per batch-tile
            const_spec((O, CK)),                             # folded block-1 weight (bf16)
            const_spec((O, T8, T)),                          # pool1+pad+depthwise folded
            const_spec((Kout, F2 * T8)),                     # pool2+flatten+linear folded
            const_spec((nrows, ncols)),                      # packed tiny constants
        ],
        out_specs=pl.BlockSpec((BT, Kout), lambda g: (g, 0)),
    )

    fn = pl.pallas_call(
        kernel,
        out_shape=jax.ShapeDtypeStruct((Bpad, Kout), jnp.float32),
        grid_spec=grid_spec,
        compiler_params=pltpu.CompilerParams(
            dimension_semantics=("parallel",)),              # batch tiles are independent
    )
    out = fn(xcol, wfold, pcombT, wflatT, smallc)
    return out[:B]


# ----------------------------------------------------------------------------- params
def make_params(key, F1, D, C, F2, Kout, W2):
    ks = jax.random.split(key, 19)
    O = D * F1
    p = {
        'w1': 0.05 * jax.random.normal(ks[0], (F1, 128), jnp.float32),   # Conv2d(1,F1,(1,128))
        'w2': 0.30 * jax.random.normal(ks[1], (O, C), jnp.float32),      # grouped (C,1) conv
        'w3': 0.20 * jax.random.normal(ks[2], (O, 16), jnp.float32),     # depthwise (1,16) conv
        'b3': 0.10 * jax.random.normal(ks[3], (O,), jnp.float32),
        'w4': 0.30 * jax.random.normal(ks[4], (F2, O), jnp.float32),     # pointwise 1x1 conv
        'wlin': 0.20 * jax.random.normal(ks[5], (Kout, F2 * W2), jnp.float32),
        'blin': 0.10 * jax.random.normal(ks[6], (Kout,), jnp.float32),
    }

    def bn(kg, kb, km, kv, n):
        return dict(gamma=1.0 + 0.1 * jax.random.normal(kg, (n,), jnp.float32),
                    beta=0.1 * jax.random.normal(kb, (n,), jnp.float32),
                    mean=0.1 * jax.random.normal(km, (n,), jnp.float32),
                    var=jax.random.uniform(kv, (n,), jnp.float32, 0.5, 1.5))

    p['bn1'] = bn(ks[7], ks[8], ks[9], ks[10], F1)
    p['bn2'] = bn(ks[11], ks[12], ks[13], ks[14], O)
    p['bn3'] = bn(ks[15], ks[16], ks[17], ks[18], F2)
    return p


# ----------------------------------------------------------------------------- reference
def eegnet_reference(x, p, *, n_spectral, n_pointwise, n_spatial, n_channels, size_output):
    """Pure-JAX (XLA) eval-mode forward, mirroring the torch.nn.Sequential exactly."""
    F1, D, F2, C = n_spectral, n_pointwise, n_spatial, n_channels
    O = D * F1
    B, _, _, T = x.shape
    eps = 1e-3
    dn = ('NCHW', 'OIHW', 'NCHW')

    def bn(h, st):
        sh = lambda v: v[None, :, None, None]
        return (h - sh(st['mean'])) / jnp.sqrt(sh(st['var']) + eps) * sh(st['gamma']) + sh(st['beta'])

    elu = lambda h: jnp.where(h > 0, h, jnp.exp(h) - 1.0)

    h = jnp.pad(x, ((0, 0), (0, 0), (0, 0), (63, 64)), mode='reflect')
    h = lax.conv_general_dilated(h, p['w1'].reshape(F1, 1, 1, 128), (1, 1), 'VALID',
                                 dimension_numbers=dn)
    h = bn(h, p['bn1'])
    h = lax.conv_general_dilated(h, p['w2'].reshape(O, 1, C, 1), (1, 1), 'VALID',
                                 dimension_numbers=dn, feature_group_count=F1)
    h = bn(h, p['bn2'])
    h = elu(h)
    h = h.reshape(B, O, 1, T // 8, 8).mean(-1)
    h = jnp.pad(h, ((0, 0), (0, 0), (0, 0), (7, 8)))
    h = lax.conv_general_dilated(h, p['w3'].reshape(O, 1, 1, 16), (1, 1), 'VALID',
                                 dimension_numbers=dn, feature_group_count=O)
    h = h + p['b3'][None, :, None, None]
    h = lax.conv_general_dilated(h, p['w4'].reshape(F2, O, 1, 1), (1, 1), 'VALID',
                                 dimension_numbers=dn)
    h = bn(h, p['bn3'])
    h = elu(h)
    h = h.reshape(B, F2, 1, T // 64, 8).mean(-1)
    h = h.reshape(B, -1)
    return h @ p['wlin'].T + p['blin']


# ----------------------------------------------------------------------------- main
if __name__ == "__main__":
    # small configuration: size_input=128, n_channels=4, n_spectral=4, n_pointwise=2,
    # n_spatial=4, size_output=4, hidden_activation='elu' (eval mode).
    B, C, T = 2, 4, 128
    F1, D, F2, Kout = 4, 2, 4, 4
    cfg = dict(n_spectral=F1, n_pointwise=D, n_spatial=F2, n_channels=C, size_output=Kout)

    key = jax.random.PRNGKey(0)
    kx, kp = jax.random.split(key)
    x = jax.random.normal(kx, (B, 1, C, T), jnp.float32)
    params = make_params(kp, F1, D, C, F2, Kout, T // 64)

    out = eegnet_pallas(x, params, **cfg)
    out = jax.block_until_ready(out)

    ref = eegnet_reference(x, params, **cfg)
    if not np.allclose(np.asarray(out), np.asarray(ref), rtol=2e-2, atol=2e-2):
        err = float(jnp.max(jnp.abs(out - ref)))
        raise SystemExit(f"mismatch vs reference (max abs err {err:.3e})")
    print("KERNEL_OK")
</pallas_src>

<mosaic_0001>
module attributes {stable_mosaic.version = 11 : i64} {
  func.func @kernel(%arg0: i32, %arg1: memref<512x256xbf16, #tpu.memory_space<vmem>>, %arg2: memref<8x512xbf16, #tpu.memory_space<vmem>>, %arg3: memref<8x16x128xf32, #tpu.memory_space<vmem>>, %arg4: memref<4x64xf32, #tpu.memory_space<vmem>>, %arg5: memref<8x14xf32, #tpu.memory_space<vmem>>, %arg6: memref<2x4xf32, #tpu.memory_space<vmem>>) attributes {dimension_semantics = [#tpu.dimension_semantics<parallel>], iteration_bounds = array<i64: 1>, scalar_prefetch = 0 : i64, scratch_operands = 0 : i64, tpu.core_type = #tpu.core_type<tc>, window_params = [{transform_indices = @transform_0, window_bounds = array<i64: 512, 256>}, {pipeline_mode = #tpu.pipeline_mode<synchronous>, transform_indices = @transform_1, window_bounds = array<i64: 8, 512>}, {pipeline_mode = #tpu.pipeline_mode<synchronous>, transform_indices = @transform_2, window_bounds = array<i64: 8, 16, 128>}, {pipeline_mode = #tpu.pipeline_mode<synchronous>, transform_indices = @transform_3, window_bounds = array<i64: 4, 64>}, {pipeline_mode = #tpu.pipeline_mode<synchronous>, transform_indices = @transform_4, window_bounds = array<i64: 8, 14>}, {transform_indices = @transform_5, window_bounds = array<i64: 2, 4>}]} {
    %c0 = arith.constant 0 : index
    %c0_0 = arith.constant 0 : index
    %0 = vector.load %arg5[%c0, %c0_0] : memref<8x14xf32, #tpu.memory_space<vmem>>, vector<8x1xf32>
    %c0_1 = arith.constant 0 : index
    %c1 = arith.constant 1 : index
    %1 = vector.load %arg5[%c0_1, %c1] : memref<8x14xf32, #tpu.memory_space<vmem>>, vector<4x8xf32>
    %c0_2 = arith.constant 0 : index
    %c9 = arith.constant 9 : index
    %2 = vector.load %arg5[%c0_2, %c9] : memref<8x14xf32, #tpu.memory_space<vmem>>, vector<4x1xf32>
    %c0_3 = arith.constant 0 : index
    %c10 = arith.constant 10 : index
    %3 = vector.load %arg5[%c0_3, %c10] : memref<8x14xf32, #tpu.memory_space<vmem>>, vector<1x4xf32>
    %c0_4 = arith.constant 0 : index
    %c0_5 = arith.constant 0 : index
    %4 = vector.load %arg2[%c0_4, %c0_5] : memref<8x512xbf16, #tpu.memory_space<vmem>>, vector<8x512xbf16>
    %c0_6 = arith.constant 0 : index
    %c0_7 = arith.constant 0 : index
    %5 = vector.load %arg1[%c0_6, %c0_7] : memref<512x256xbf16, #tpu.memory_space<vmem>>, vector<512x256xbf16>
    %cst = arith.constant dense<0.000000e+00> : vector<8x256xf32>
    %6 = tpu.matmul %4, %5, %cst {dimension_numbers = #tpu.dot_dimension_numbers<[1], [0], [0], [1], [0, 0, 1, 1], [], []>} : vector<8x512xbf16>, vector<512x256xbf16>, vector<8x256xf32> -> vector<8x256xf32>
    %7 = vector.broadcast %0 : vector<8x1xf32> to vector<8x256xf32>
    %8 = arith.addf %6, %7 : vector<8x256xf32>
    %cst_8 = arith.constant 0.000000e+00 : f32
    %9 = vector.broadcast %cst_8 : f32 to vector<8x256xf32>
    %10 = arith.cmpf ogt, %8, %9 : vector<8x256xf32>
    %cst_9 = arith.constant 0.000000e+00 : f32
    %11 = vector.broadcast %cst_9 : f32 to vector<8x256xf32>
    %12 = arith.minimumf %8, %11 : vector<8x256xf32>
    %13 = math.exp %12 : vector<8x256xf32>
    %cst_10 = arith.constant 1.000000e+00 : f32
    %14 = vector.broadcast %cst_10 : f32 to vector<8x256xf32>
    %15 = arith.subf %13, %14 : vector<8x256xf32>
    %16 = arith.select %10, %8, %15 : vector<8x256xi1>, vector<8x256xf32>
    %17 = vector.extract_strided_slice %16 {offsets = [0, 0], sizes = [8, 128], strides = [1, 1]} : vector<8x256xf32> to vector<8x128xf32>
    %18 = vector.extract_strided_slice %17 {offsets = [0, 0], sizes = [1, 128], strides = [1, 1]} : vector<8x128xf32> to vector<1x128xf32>
    %c0_11 = arith.constant 0 : index
    %c0_12 = arith.constant 0 : index
    %c0_13 = arith.constant 0 : index
    %19 = vector.load %arg3[%c0_11, %c0_12, %c0_13] : memref<8x16x128xf32, #tpu.memory_space<vmem>>, vector<1x16x128xf32>
    %20 = vector.shape_cast %19 : vector<1x16x128xf32> to vector<16x128xf32>
    %cst_14 = arith.constant dense<0.000000e+00> : vector<1x16xf32>
    %21 = tpu.matmul %18, %20, %cst_14 {dimension_numbers = #tpu.dot_dimension_numbers<[1], [1], [0], [0], [0, 0, 1, 0], [], []>} : vector<1x128xf32>, vector<16x128xf32>, vector<1x16xf32> -> vector<1x16xf32>
    %22 = vector.extract_strided_slice %17 {offsets = [1, 0], sizes = [1, 128], strides = [1, 1]} : vector<8x128xf32> to vector<1x128xf32>
    %c1_15 = arith.constant 1 : index
    %c0_16 = arith.constant 0 : index
    %c0_17 = arith.constant 0 : index
    %23 = vector.load %arg3[%c1_15, %c0_16, %c0_17] : memref<8x16x128xf32, #tpu.memory_space<vmem>>, vector<1x16x128xf32>
    %24 = vector.shape_cast %23 : vector<1x16x128xf32> to vector<16x128xf32>
    %cst_18 = arith.constant dense<0.000000e+00> : vector<1x16xf32>
    %25 = tpu.matmul %22, %24, %cst_18 {dimension_numbers = #tpu.dot_dimension_numbers<[1], [1], [0], [0], [0, 0, 1, 0], [], []>} : vector<1x128xf32>, vector<16x128xf32>, vector<1x16xf32> -> vector<1x16xf32>
    %26 = vector.extract_strided_slice %17 {offsets = [2, 0], sizes = [1, 128], strides = [1, 1]} : vector<8x128xf32> to vector<1x128xf32>
    %c2 = arith.constant 2 : index
    %c0_19 = arith.constant 0 : index
    %c0_20 = arith.constant 0 : index
    %27 = vector.load %arg3[%c2, %c0_19, %c0_20] : memref<8x16x128xf32, #tpu.memory_space<vmem>>, vector<1x16x128xf32>
    %28 = vector.shape_cast %27 : vector<1x16x128xf32> to vector<16x128xf32>
    %cst_21 = arith.constant dense<0.000000e+00> : vector<1x16xf32>
    %29 = tpu.matmul %26, %28, %cst_21 {dimension_numbers = #tpu.dot_dimension_numbers<[1], [1], [0], [0], [0, 0, 1, 0], [], []>} : vector<1x128xf32>, vector<16x128xf32>, vector<1x16xf32> -> vector<1x16xf32>
    %30 = vector.extract_strided_slice %17 {offsets = [3, 0], sizes = [1, 128], strides = [1, 1]} : vector<8x128xf32> to vector<1x128xf32>
    %c3 = arith.constant 3 : index
    %c0_22 = arith.constant 0 : index
    %c0_23 = arith.constant 0 : index
    %31 = vector.load %arg3[%c3, %c0_22, %c0_23] : memref<8x16x128xf32, #tpu.memory_space<vmem>>, vector<1x16x128xf32>
    %32 = vector.shape_cast %31 : vector<1x16x128xf32> to vector<16x128xf32>
    %cst_24 = arith.constant dense<0.000000e+00> : vector<1x16xf32>
    %33 = tpu.matmul %30, %32, %cst_24 {dimension_numbers = #tpu.dot_dimension_numbers<[1], [1], [0], [0], [0, 0, 1, 0], [], []>} : vector<1x128xf32>, vector<16x128xf32>, vector<1x16xf32> -> vector<1x16xf32>
    %34 = vector.extract_strided_slice %17 {offsets = [4, 0], sizes = [1, 128], strides = [1, 1]} : vector<8x128xf32> to vector<1x128xf32>
    %c4 = arith.constant 4 : index
    %c0_25 = arith.constant 0 : index
    %c0_26 = arith.constant 0 : index
    %35 = vector.load %arg3[%c4, %c0_25, %c0_26] : memref<8x16x128xf32, #tpu.memory_space<vmem>>, vector<1x16x128xf32>
    %36 = vector.shape_cast %35 : vector<1x16x128xf32> to vector<16x128xf32>
    %cst_27 = arith.constant dense<0.000000e+00> : vector<1x16xf32>
    %37 = tpu.matmul %34, %36, %cst_27 {dimension_numbers = #tpu.dot_dimension_numbers<[1], [1], [0], [0], [0, 0, 1, 0], [], []>} : vector<1x128xf32>, vector<16x128xf32>, vector<1x16xf32> -> vector<1x16xf32>
    %38 = vector.extract_strided_slice %17 {offsets = [5, 0], sizes = [1, 128], strides = [1, 1]} : vector<8x128xf32> to vector<1x128xf32>
    %c5 = arith.constant 5 : index
    %c0_28 = arith.constant 0 : index
    %c0_29 = arith.constant 0 : index
    %39 = vector.load %arg3[%c5, %c0_28, %c0_29] : memref<8x16x128xf32, #tpu.memory_space<vmem>>, vector<1x16x128xf32>
    %40 = vector.shape_cast %39 : vector<1x16x128xf32> to vector<16x128xf32>
    %cst_30 = arith.constant dense<0.000000e+00> : vector<1x16xf32>
    %41 = tpu.matmul %38, %40, %cst_30 {dimension_numbers = #tpu.dot_dimension_numbers<[1], [1], [0], [0], [0, 0, 1, 0], [], []>} : vector<1x128xf32>, vector<16x128xf32>, vector<1x16xf32> -> vector<1x16xf32>
    %42 = vector.extract_strided_slice %17 {offsets = [6, 0], sizes = [1, 128], strides = [1, 1]} : vector<8x128xf32> to vector<1x128xf32>
    %c6 = arith.constant 6 : index
    %c0_31 = arith.constant 0 : index
    %c0_32 = arith.constant 0 : index
    %43 = vector.load %arg3[%c6, %c0_31, %c0_32] : memref<8x16x128xf32, #tpu.memory_space<vmem>>, vector<1x16x128xf32>
    %44 = vector.shape_cast %43 : vector<1x16x128xf32> to vector<16x128xf32>
    %cst_33 = arith.constant dense<0.000000e+00> : vector<1x16xf32>
    %45 = tpu.matmul %42, %44, %cst_33 {dimension_numbers = #tpu.dot_dimension_numbers<[1], [1], [0], [0], [0, 0, 1, 0], [], []>} : vector<1x128xf32>, vector<16x128xf32>, vector<1x16xf32> -> vector<1x16xf32>
    %46 = vector.extract_strided_slice %17 {offsets = [7, 0], sizes = [1, 128], strides = [1, 1]} : vector<8x128xf32> to vector<1x128xf32>
    %c7 = arith.constant 7 : index
    %c0_34 = arith.constant 0 : index
    %c0_35 = arith.constant 0 : index
    %47 = vector.load %arg3[%c7, %c0_34, %c0_35] : memref<8x16x128xf32, #tpu.memory_space<vmem>>, vector<1x16x128xf32>
    %48 = vector.shape_cast %47 : vector<1x16x128xf32> to vector<16x128xf32>
    %cst_36 = arith.constant dense<0.000000e+00> : vector<1x16xf32>
    %49 = tpu.matmul %46, %48, %cst_36 {dimension_numbers = #tpu.dot_dimension_numbers<[1], [1], [0], [0], [0, 0, 1, 0], [], []>} : vector<1x128xf32>, vector<16x128xf32>, vector<1x16xf32> -> vector<1x16xf32>
    %50 = tpu.concatenate %21, %25, %29, %33, %37, %41, %45, %49 in 0 : vector<1x16xf32>, vector<1x16xf32>, vector<1x16xf32>, vector<1x16xf32>, vector<1x16xf32>, vector<1x16xf32>, vector<1x16xf32>, vector<1x16xf32> -> vector<8x16xf32>
    %cst_37 = arith.constant dense<0.000000e+00> : vector<4x16xf32>
    %51 = tpu.matmul %1, %50, %cst_37 {dimension_numbers = #tpu.dot_dimension_numbers<[1], [0], [0], [1], [0, 0, 1, 1], [], []>} : vector<4x8xf32>, vector<8x16xf32>, vector<4x16xf32> -> vector<4x16xf32>
    %52 = vector.broadcast %2 : vector<4x1xf32> to vector<4x16xf32>
    %53 = arith.addf %51, %52 : vector<4x16xf32>
    %cst_38 = arith.constant 0.000000e+00 : f32
    %54 = vector.broadcast %cst_38 : f32 to vector<4x16xf32>
    %55 = arith.cmpf ogt, %53, %54 : vector<4x16xf32>
    %cst_39 = arith.constant 0.000000e+00 : f32
    %56 = vector.broadcast %cst_39 : f32 to vector<4x16xf32>
    %57 = arith.minimumf %53, %56 : vector<4x16xf32>
    %58 = math.exp %57 : vector<4x16xf32>
    %cst_40 = arith.constant 1.000000e+00 : f32
    %59 = vector.broadcast %cst_40 : f32 to vector<4x16xf32>
    %60 = arith.subf %58, %59 : vector<4x16xf32>
    %61 = arith.select %55, %53, %60 : vector<4x16xi1>, vector<4x16xf32>
    %62 = vector.extract_strided_slice %61 {offsets = [0, 0], sizes = [1, 16], strides = [1, 1]} : vector<4x16xf32> to vector<1x16xf32>
    %c0_41 = arith.constant 0 : index
    %c0_42 = arith.constant 0 : index
    %63 = vector.load %arg4[%c0_41, %c0_42] : memref<4x64xf32, #tpu.memory_space<vmem>>, vector<4x16xf32>
    %cst_43 = arith.constant dense<0.000000e+00> : vector<1x4xf32>
    %64 = tpu.matmul %62, %63, %cst_43 {dimension_numbers = #tpu.dot_dimension_numbers<[1], [1], [0], [0], [0, 0, 1, 0], [], []>} : vector<1x16xf32>, vector<4x16xf32>, vector<1x4xf32> -> vector<1x4xf32>
    %65 = arith.addf %3, %64 : vector<1x4xf32>
    %66 = vector.extract_strided_slice %61 {offsets = [1, 0], sizes = [1, 16], strides = [1, 1]} : vector<4x16xf32> to vector<1x16xf32>
    %c0_44 = arith.constant 0 : index
    %c16 = arith.constant 16 : index
    %67 = vector.load %arg4[%c0_44, %c16] : memref<4x64xf32, #tpu.memory_space<vmem>>, vector<4x16xf32>
    %cst_45 = arith.constant dense<0.000000e+00> : vector<1x4xf32>
    %68 = tpu.matmul %66, %67, %cst_45 {dimension_numbers = #tpu.dot_dimension_numbers<[1], [1], [0], [0], [0, 0, 1, 0], [], []>} : vector<1x16xf32>, vector<4x16xf32>, vector<1x4xf32> -> vector<1x4xf32>
    %69 = arith.addf %65, %68 : vector<1x4xf32>
    %70 = vector.extract_strided_slice %61 {offsets = [2, 0], sizes = [1, 16], strides = [1, 1]} : vector<4x16xf32> to vector<1x16xf32>
    %c0_46 = arith.constant 0 : index
    %c32 = arith.constant 32 : index
    %71 = vector.load %arg4[%c0_46, %c32] : memref<4x64xf32, #tpu.memory_space<vmem>>, vector<4x16xf32>
    %cst_47 = arith.constant dense<0.000000e+00> : vector<1x4xf32>
    %72 = tpu.matmul %70, %71, %cst_47 {dimension_numbers = #tpu.dot_dimension_numbers<[1], [1], [0], [0], [0, 0, 1, 0], [], []>} : vector<1x16xf32>, vector<4x16xf32>, vector<1x4xf32> -> vector<1x4xf32>
    %73 = arith.addf %69, %72 : vector<1x4xf32>
    %74 = vector.extract_strided_slice %61 {offsets = [3, 0], sizes = [1, 16], strides = [1, 1]} : vector<4x16xf32> to vector<1x16xf32>
    %c0_48 = arith.constant 0 : index
    %c48 = arith.constant 48 : index
    %75 = vector.load %arg4[%c0_48, %c48] : memref<4x64xf32, #tpu.memory_space<vmem>>, vector<4x16xf32>
    %cst_49 = arith.constant dense<0.000000e+00> : vector<1x4xf32>
    %76 = tpu.matmul %74, %75, %cst_49 {dimension_numbers = #tpu.dot_dimension_numbers<[1], [1], [0], [0], [0, 0, 1, 0], [], []>} : vector<1x16xf32>, vector<4x16xf32>, vector<1x4xf32> -> vector<1x4xf32>
    %77 = arith.addf %73, %76 : vector<1x4xf32>
    %78 = vector.extract_strided_slice %16 {offsets = [0, 128], sizes = [8, 128], strides = [1, 1]} : vector<8x256xf32> to vector<8x128xf32>
    %79 = vector.extract_strided_slice %78 {offsets = [0, 0], sizes = [1, 128], strides = [1, 1]} : vector<8x128xf32> to vector<1x128xf32>
    %c0_50 = arith.constant 0 : index
    %c0_51 = arith.constant 0 : index
    %c0_52 = arith.constant 0 : index
    %80 = vector.load %arg3[%c0_50, %c0_51, %c0_52] : memref<8x16x128xf32, #tpu.memory_space<vmem>>, vector<1x16x128xf32>
    %81 = vector.shape_cast %80 : vector<1x16x128xf32> to vector<16x128xf32>
    %cst_53 = arith.constant dense<0.000000e+00> : vector<1x16xf32>
    %82 = tpu.matmul %79, %81, %cst_53 {dimension_numbers = #tpu.dot_dimension_numbers<[1], [1], [0], [0], [0, 0, 1, 0], [], []>} : vector<1x128xf32>, vector<16x128xf32>, vector<1x16xf32> -> vector<1x16xf32>
    %83 = vector.extract_strided_slice %78 {offsets = [1, 0], sizes = [1, 128], strides = [1, 1]} : vector<8x128xf32> to vector<1x128xf32>
    %c1_54 = arith.constant 1 : index
    %c0_55 = arith.constant 0 : index
    %c0_56 = arith.constant 0 : index
    %84 = vector.load %arg3[%c1_54, %c0_55, %c0_56] : memref<8x16x128xf32, #tpu.memory_space<vmem>>, vector<1x16x128xf32>
    %85 = vector.shape_cast %84 : vector<1x16x128xf32> to vector<16x128xf32>
    %cst_57 = arith.constant dense<0.000000e+00> : vector<1x16xf32>
    %86 = tpu.matmul %83, %85, %cst_57 {dimension_numbers = #tpu.dot_dimension_numbers<[1], [1], [0], [0], [0, 0, 1, 0], [], []>} : vector<1x128xf32>, vector<16x128xf32>, vector<1x16xf32> -> vector<1x16xf32>
    %87 = vector.extract_strided_slice %78 {offsets = [2, 0], sizes = [1, 128], strides = [1, 1]} : vector<8x128xf32> to vector<1x128xf32>
    %c2_58 = arith.constant 2 : index
    %c0_59 = arith.constant 0 : index
    %c0_60 = arith.constant 0 : index
    %88 = vector.load %arg3[%c2_58, %c0_59, %c0_60] : memref<8x16x128xf32, #tpu.memory_space<vmem>>, vector<1x16x128xf32>
    %89 = vector.shape_cast %88 : vector<1x16x128xf32> to vector<16x128xf32>
    %cst_61 = arith.constant dense<0.000000e+00> : vector<1x16xf32>
    %90 = tpu.matmul %87, %89, %cst_61 {dimension_numbers = #tpu.dot_dimension_numbers<[1], [1], [0], [0], [0, 0, 1, 0], [], []>} : vector<1x128xf32>, vector<16x128xf32>, vector<1x16xf32> -> vector<1x16xf32>
    %91 = vector.extract_strided_slice %78 {offsets = [3, 0], sizes = [1, 128], strides = [1, 1]} : vector<8x128xf32> to vector<1x128xf32>
    %c3_62 = arith.constant 3 : index
    %c0_63 = arith.constant 0 : index
    %c0_64 = arith.constant 0 : index
    %92 = vector.load %arg3[%c3_62, %c0_63, %c0_64] : memref<8x16x128xf32, #tpu.memory_space<vmem>>, vector<1x16x128xf32>
    %93 = vector.shape_cast %92 : vector<1x16x128xf32> to vector<16x128xf32>
    %cst_65 = arith.constant dense<0.000000e+00> : vector<1x16xf32>
    %94 = tpu.matmul %91, %93, %cst_65 {dimension_numbers = #tpu.dot_dimension_numbers<[1], [1], [0], [0], [0, 0, 1, 0], [], []>} : vector<1x128xf32>, vector<16x128xf32>, vector<1x16xf32> -> vector<1x16xf32>
    %95 = vector.extract_strided_slice %78 {offsets = [4, 0], sizes = [1, 128], strides = [1, 1]} : vector<8x128xf32> to vector<1x128xf32>
    %c4_66 = arith.constant 4 : index
    %c0_67 = arith.constant 0 : index
    %c0_68 = arith.constant 0 : index
    %96 = vector.load %arg3[%c4_66, %c0_67, %c0_68] : memref<8x16x128xf32, #tpu.memory_space<vmem>>, vector<1x16x128xf32>
    %97 = vector.shape_cast %96 : vector<1x16x128xf32> to vector<16x128xf32>
    %cst_69 = arith.constant dense<0.000000e+00> : vector<1x16xf32>
    %98 = tpu.matmul %95, %97, %cst_69 {dimension_numbers = #tpu.dot_dimension_numbers<[1], [1], [0], [0], [0, 0, 1, 0], [], []>} : vector<1x128xf32>, vector<16x128xf32>, vector<1x16xf32> -> vector<1x16xf32>
    %99 = vector.extract_strided_slice %78 {offsets = [5, 0], sizes = [1, 128], strides = [1, 1]} : vector<8x128xf32> to vector<1x128xf32>
    %c5_70 = arith.constant 5 : index
    %c0_71 = arith.constant 0 : index
    %c0_72 = arith.constant 0 : index
    %100 = vector.load %arg3[%c5_70, %c0_71, %c0_72] : memref<8x16x128xf32, #tpu.memory_space<vmem>>, vector<1x16x128xf32>
    %101 = vector.shape_cast %100 : vector<1x16x128xf32> to vector<16x128xf32>
    %cst_73 = arith.constant dense<0.000000e+00> : vector<1x16xf32>
    %102 = tpu.matmul %99, %101, %cst_73 {dimension_numbers = #tpu.dot_dimension_numbers<[1], [1], [0], [0], [0, 0, 1, 0], [], []>} : vector<1x128xf32>, vector<16x128xf32>, vector<1x16xf32> -> vector<1x16xf32>
    %103 = vector.extract_strided_slice %78 {offsets = [6, 0], sizes = [1, 128], strides = [1, 1]} : vector<8x128xf32> to vector<1x128xf32>
    %c6_74 = arith.constant 6 : index
    %c0_75 = arith.constant 0 : index
    %c0_76 = arith.constant 0 : index
    %104 = vector.load %arg3[%c6_74, %c0_75, %c0_76] : memref<8x16x128xf32, #tpu.memory_space<vmem>>, vector<1x16x128xf32>
    %105 = vector.shape_cast %104 : vector<1x16x128xf32> to vector<16x128xf32>
    %cst_77 = arith.constant dense<0.000000e+00> : vector<1x16xf32>
    %106 = tpu.matmul %103, %105, %cst_77 {dimension_numbers = #tpu.dot_dimension_numbers<[1], [1], [0], [0], [0, 0, 1, 0], [], []>} : vector<1x128xf32>, vector<16x128xf32>, vector<1x16xf32> -> vector<1x16xf32>
    %107 = vector.extract_strided_slice %78 {offsets = [7, 0], sizes = [1, 128], strides = [1, 1]} : vector<8x128xf32> to vector<1x128xf32>
    %c7_78 = arith.constant 7 : index
    %c0_79 = arith.constant 0 : index
    %c0_80 = arith.constant 0 : index
    %108 = vector.load %arg3[%c7_78, %c0_79, %c0_80] : memref<8x16x128xf32, #tpu.memory_space<vmem>>, vector<1x16x128xf32>
    %109 = vector.shape_cast %108 : vector<1x16x128xf32> to vector<16x128xf32>
    %cst_81 = arith.constant dense<0.000000e+00> : vector<1x16xf32>
    %110 = tpu.matmul %107, %109, %cst_81 {dimension_numbers = #tpu.dot_dimension_numbers<[1], [1], [0], [0], [0, 0, 1, 0], [], []>} : vector<1x128xf32>, vector<16x128xf32>, vector<1x16xf32> -> vector<1x16xf32>
    %111 = tpu.concatenate %82, %86, %90, %94, %98, %102, %106, %110 in 0 : vector<1x16xf32>, vector<1x16xf32>, vector<1x16xf32>, vector<1x16xf32>, vector<1x16xf32>, vector<1x16xf32>, vector<1x16xf32>, vector<1x16xf32> -> vector<8x16xf32>
    %cst_82 = arith.constant dense<0.000000e+00> : vector<4x16xf32>
    %112 = tpu.matmul %1, %111, %cst_82 {dimension_numbers = #tpu.dot_dimension_numbers<[1], [0], [0], [1], [0, 0, 1, 1], [], []>} : vector<4x8xf32>, vector<8x16xf32>, vector<4x16xf32> -> vector<4x16xf32>
    %113 = vector.broadcast %2 : vector<4x1xf32> to vector<4x16xf32>
    %114 = arith.addf %112, %113 : vector<4x16xf32>
    %cst_83 = arith.constant 0.000000e+00 : f32
    %115 = vector.broadcast %cst_83 : f32 to vector<4x16xf32>
    %116 = arith.cmpf ogt, %114, %115 : vector<4x16xf32>
    %cst_84 = arith.constant 0.000000e+00 : f32
    %117 = vector.broadcast %cst_84 : f32 to vector<4x16xf32>
    %118 = arith.minimumf %114, %117 : vector<4x16xf32>
    %119 = math.exp %118 : vector<4x16xf32>
    %cst_85 = arith.constant 1.000000e+00 : f32
    %120 = vector.broadcast %cst_85 : f32 to vector<4x16xf32>
    %121 = arith.subf %119, %120 : vector<4x16xf32>
    %122 = arith.select %116, %114, %121 : vector<4x16xi1>, vector<4x16xf32>
    %123 = vector.extract_strided_slice %122 {offsets = [0, 0], sizes = [1, 16], strides = [1, 1]} : vector<4x16xf32> to vector<1x16xf32>
    %c0_86 = arith.constant 0 : index
    %c0_87 = arith.constant 0 : index
    %124 = vector.load %arg4[%c0_86, %c0_87] : memref<4x64xf32, #tpu.memory_space<vmem>>, vector<4x16xf32>
    %cst_88 = arith.constant dense<0.000000e+00> : vector<1x4xf32>
    %125 = tpu.matmul %123, %124, %cst_88 {dimension_numbers = #tpu.dot_dimension_numbers<[1], [1], [0], [0], [0, 0, 1, 0], [], []>} : vector<1x16xf32>, vector<4x16xf32>, vector<1x4xf32> -> vector<1x4xf32>
    %126 = arith.addf %3, %125 : vector<1x4xf32>
    %127 = vector.extract_strided_slice %122 {offsets = [1, 0], sizes = [1, 16], strides = [1, 1]} : vector<4x16xf32> to vector<1x16xf32>
    %c0_89 = arith.constant 0 : index
    %c16_90 = arith.constant 16 : index
    %128 = vector.load %arg4[%c0_89, %c16_90] : memref<4x64xf32, #tpu.memory_space<vmem>>, vector<4x16xf32>
    %cst_91 = arith.constant dense<0.000000e+00> : vector<1x4xf32>
    %129 = tpu.matmul %127, %128, %cst_91 {dimension_numbers = #tpu.dot_dimension_numbers<[1], [1], [0], [0], [0, 0, 1, 0], [], []>} : vector<1x16xf32>, vector<4x16xf32>, vector<1x4xf32> -> vector<1x4xf32>
    %130 = arith.addf %126, %129 : vector<1x4xf32>
    %131 = vector.extract_strided_slice %122 {offsets = [2, 0], sizes = [1, 16], strides = [1, 1]} : vector<4x16xf32> to vector<1x16xf32>
    %c0_92 = arith.constant 0 : index
    %c32_93 = arith.constant 32 : index
    %132 = vector.load %arg4[%c0_92, %c32_93] : memref<4x64xf32, #tpu.memory_space<vmem>>, vector<4x16xf32>
    %cst_94 = arith.constant dense<0.000000e+00> : vector<1x4xf32>
    %133 = tpu.matmul %131, %132, %cst_94 {dimension_numbers = #tpu.dot_dimension_numbers<[1], [1], [0], [0], [0, 0, 1, 0], [], []>} : vector<1x16xf32>, vector<4x16xf32>, vector<1x4xf32> -> vector<1x4xf32>
    %134 = arith.addf %130, %133 : vector<1x4xf32>
    %135 = vector.extract_strided_slice %122 {offsets = [3, 0], sizes = [1, 16], strides = [1, 1]} : vector<4x16xf32> to vector<1x16xf32>
    %c0_95 = arith.constant 0 : index
    %c48_96 = arith.constant 48 : index
    %136 = vector.load %arg4[%c0_95, %c48_96] : memref<4x64xf32, #tpu.memory_space<vmem>>, vector<4x16xf32>
    %cst_97 = arith.constant dense<0.000000e+00> : vector<1x4xf32>
    %137 = tpu.matmul %135, %136, %cst_97 {dimension_numbers = #tpu.dot_dimension_numbers<[1], [1], [0], [0], [0, 0, 1, 0], [], []>} : vector<1x16xf32>, vector<4x16xf32>, vector<1x4xf32> -> vector<1x4xf32>
    %138 = arith.addf %134, %137 : vector<1x4xf32>
    %139 = tpu.concatenate %77, %138 in 0 : vector<1x4xf32>, vector<1x4xf32> -> vector<2x4xf32>
    %c0_98 = arith.constant 0 : index
    %c0_99 = arith.constant 0 : index
    %140 = vector.load %arg6[%c0_98, %c0_99] : memref<2x4xf32, #tpu.memory_space<vmem>>, vector<2x4xf32>
    tpu.vector_store %arg6[%c0_98, %c0_99], %139 {strides = array<i32>} : memref<2x4xf32, #tpu.memory_space<vmem>>, vector<2x4xf32>,
    return
  }
  func.func @transform_0(%arg0: i32) -> (i32, i32) {
    %c0_i32 = arith.constant 0 : i32
    %c0_i32_0 = arith.constant 0 : i32
    return %c0_i32, %arg0 : i32, i32
  }
  func.func @transform_1(%arg0: i32) -> (i32, i32) {
    %c0_i32 = arith.constant 0 : i32
    %c0_i32_0 = arith.constant 0 : i32
    %c0_i32_1 = arith.constant 0 : i32
    return %c0_i32, %c0_i32_0 : i32, i32
  }
  func.func @transform_2(%arg0: i32) -> (i32, i32, i32) {
    %c0_i32 = arith.constant 0 : i32
    %c0_i32_0 = arith.constant 0 : i32
    %c0_i32_1 = arith.constant 0 : i32
    %c0_i32_2 = arith.constant 0 : i32
    return %c0_i32, %c0_i32_0, %c0_i32_1 : i32, i32, i32
  }
  func.func @transform_3(%arg0: i32) -> (i32, i32) {
    %c0_i32 = arith.constant 0 : i32
    %c0_i32_0 = arith.constant 0 : i32
    %c0_i32_1 = arith.constant 0 : i32
    return %c0_i32, %c0_i32_0 : i32, i32
  }
  func.func @transform_4(%arg0: i32) -> (i32, i32) {
    %c0_i32 = arith.constant 0 : i32
    %c0_i32_0 = arith.constant 0 : i32
    %c0_i32_1 = arith.constant 0 : i32
    return %c0_i32, %c0_i32_0 : i32, i32
  }
  func.func @transform_5(%arg0: i32) -> (i32, i32) {
    %c0_i32 = arith.constant 0 : i32
    %c0_i32_0 = arith.constant 0 : i32
    return %arg0, %c0_i32 : i32, i32
  }
}

</mosaic_0001>

<llo_original>
// kernel: tpu_custom_call.1
$region0: #{tpu_custom_call.1}
  #allocation0 [shape = 'u32[]', space=smem, size = 0x4, offset = 0x4, fixed_abs, tag = 'smem constant byte address 0x4 - core index']
  #allocation1 [shape = 'u32[144,128]{1,0:T(1,128)}', space=vmem, size = 0x12000, scoped, tag = 'internal scratch']
  %s0 = inlined_call_operand.hbm [shape: bf16[512,256], index: 0, kind: input, shape index: {}]
  %s1 = inlined_call_operand.hbm [shape: bf16[8,512], index: 1, kind: input, shape index: {}]
  %s2 = inlined_call_operand.hbm [shape: f32[8,16,128], index: 2, kind: input, shape index: {}]
  %s3 = inlined_call_operand.vmem [shape: f32[4,64], index: 3, kind: input, shape index: {}]
  %s4 = inlined_call_operand.hbm [shape: f32[8,14], index: 4, kind: input, shape index: {}]
  %s5 = inlined_call_operand.hbm [shape: f32[2,4], index: 5, kind: output, shape index: {}]
  %s6 = sld [smem:[#allocation0]]
  $region46: #{tpu_custom_call.1} parent=0
    _
  %s8 = ssub.s32 1, %s6
  %s9 = scalar_select 0, %s8, %s6
  $region1: #{tpu_custom_call.1} parent=0
    #allocation2 [shape = 'u8[262144]{0}', space=vmem, size = 0x40000, scoped, tag = 'input window, operand 0, single buffered']
    #allocation3 [shape = 's32[1]{0}', space=sflag, size = 0x4, scoped, tag = 'scoped memory for tpu_custom_call.1']
    #allocation4 [shape = 's32[1]{0}', space=sflag, size = 0x4, scoped, tag = 'scoped memory for tpu_custom_call.1']
    #allocation5 [shape = 'u8[8192]{0}', space=vmem, size = 0x2000, scoped, tag = 'input window, operand 1, single buffered']
    #allocation6 [shape = 's32[1]{0}', space=sflag, size = 0x4, scoped, tag = 'scoped memory for tpu_custom_call.1']
    #allocation7 [shape = 'u8[65536]{0}', space=vmem, size = 0x10000, scoped, tag = 'input window, operand 2, single buffered']
    #allocation8 [shape = 'u8[4096]{0}', space=vmem, size = 0x1000, scoped, tag = 'input window, operand 4, single buffered']
    #allocation9 [shape = 's32[1]{0}', space=sflag, size = 0x4, scoped, tag = 'scoped memory for tpu_custom_call.1']
    #allocation10 [shape = 'u8[1024]{0}', space=vmem, size = 0x400, scoped, tag = 'output window, operand 0, single buffered']
    %10 = vsyncpa [#allocation3], 0
    %11 = vsyncpa [#allocation6], 0
    %12 = vsyncpa [#allocation9], 0
    %13 = vsyncpa [#allocation4], 0
    // Predicated region
    $region2: #{tpu_custom_call.1} parent=1 // pred_check
      _
    $region3: #{tpu_custom_call.1} parent=1 // pred_check_branch
      %15 = sbr.rel (0) target = $region5
    $region4: #{tpu_custom_call.1} parent=1 // pred_region
      %s17 = ssub.s32 8192, 8192
      %18 = vsyncadd [#allocation3], %s17
      %s19 = sshll.u32 [#allocation2], 4
      %s20 = int_to_ptr.vmem [resolvable:$true] %s19
      %25 = dma.hbm_to_vmem [thread:$0]  %s0, 8192, %s20, [#allocation3], 128, 128, 8
    $region5: #{tpu_custom_call.1} parent=1 // pred_fallthru
      _
    // Predicated region
    $region6: #{tpu_custom_call.1} parent=1 // pred_check
      _
    $region7: #{tpu_custom_call.1} parent=1 // pred_check_branch
      %27 = sbr.rel (0) target = $region9
    $region8: #{tpu_custom_call.1} parent=1 // pred_region
      %s29 = ssub.s32 256, 256
      %30 = vsyncadd [#allocation6], %s29
      %s32 = sshll.u32 [#allocation5], 4
      %s33 = int_to_ptr.vmem [resolvable:$true] %s32
      %35 = dma.hbm_to_vmem [thread:$0]  %s1, 256, %s33, [#allocation6]
    $region9: #{tpu_custom_call.1} parent=1 // pred_fallthru
      _
    // Predicated region
    $region10: #{tpu_custom_call.1} parent=1 // pred_check
      _
    $region11: #{tpu_custom_call.1} parent=1 // pred_check_branch
      %37 = sbr.rel (0) target = $region13
    $region12: #{tpu_custom_call.1} parent=1 // pred_region
      %s39 = ssub.s32 2048, 2048
      %40 = vsyncadd [#allocation6], %s39
      %s41 = sshll.u32 [#allocation7], 4
      %s42 = int_to_ptr.vmem [resolvable:$true] %s41
      %47 = dma.hbm_to_vmem [thread:$0]  %s2, 2048, %s42, [#allocation6], 128, 128, 8
    $region13: #{tpu_custom_call.1} parent=1 // pred_fallthru
      _
    // Predicated region
    $region14: #{tpu_custom_call.1} parent=1 // pred_check
      _
    $region15: #{tpu_custom_call.1} parent=1 // pred_check_branch
      %49 = sbr.rel (0) target = $region17
    $region16: #{tpu_custom_call.1} parent=1 // pred_region
      _
    $region17: #{tpu_custom_call.1} parent=1 // pred_fallthru
      _
    // Predicated region
    $region18: #{tpu_custom_call.1} parent=1 // pred_check
      _
    $region19: #{tpu_custom_call.1} parent=1 // pred_check_branch
      %51 = sbr.rel (0) target = $region21
    $region20: #{tpu_custom_call.1} parent=1 // pred_region
      %s53 = ssub.s32 128, 128
      %54 = vsyncadd [#allocation9], %s53
      %s56 = sshll.u32 [#allocation8], 4
      %s57 = int_to_ptr.vmem [resolvable:$true] %s56
      %59 = dma.hbm_to_vmem [thread:$0]  %s4, 128, %s57, [#allocation9]
    $region21: #{tpu_custom_call.1} parent=1 // pred_fallthru
      _
    // Predicated region
    $region22: #{tpu_custom_call.1} parent=1 // pred_check
      _
    $region23: #{tpu_custom_call.1} parent=1 // pred_check_branch
      %61 = sbr.rel (0) target = $region25
    $region24: #{tpu_custom_call.1} parent=1 // pred_region
      %62 = dma.done [#allocation3], 8192
    $region25: #{tpu_custom_call.1} parent=1 // pred_fallthru
      _
    // Predicated region
    $region26: #{tpu_custom_call.1} parent=1 // pred_check
      _
    $region27: #{tpu_custom_call.1} parent=1 // pred_check_branch
      %64 = sbr.rel (0) target = $region29
    $region28: #{tpu_custom_call.1} parent=1 // pred_region
      %65 = dma.done [#allocation6], 256
    $region29: #{tpu_custom_call.1} parent=1 // pred_fallthru
      _
    // Predicated region
    $region30: #{tpu_custom_call.1} parent=1 // pred_check
      _
    $region31: #{tpu_custom_call.1} parent=1 // pred_check_branch
      %67 = sbr.rel (0) target = $region33
    $region32: #{tpu_custom_call.1} parent=1 // pred_region
      %68 = dma.done [#allocation6], 2048
    $region33: #{tpu_custom_call.1} parent=1 // pred_fallthru
      _
    // Predicated region
    $region34: #{tpu_custom_call.1} parent=1 // pred_check
      _
    $region35: #{tpu_custom_call.1} parent=1 // pred_check_branch
      %70 = sbr.rel (0) target = $region37
    $region36: #{tpu_custom_call.1} parent=1 // pred_region
      %71 = dma.done [#allocation9], 128
    $region37: #{tpu_custom_call.1} parent=1 // pred_fallthru
      _
    %v72 = vld [vmem:[#allocation8] sm:$0xff]
    %v73 = vld [vmem:[#allocation8] sm:$0xf]
    %v74 = vld [vmem:[#allocation8] sm:$0x1]
    %v75 = vld [vmem:[#allocation5] sm:$0xff]
    %v76 = vld [vmem:[#allocation5 + $0x8] sm:$0xff]
    %v77 = vld [vmem:[#allocation2] sm:$0xff]
    %v78 = vld [vmem:[#allocation2 + $0x8] sm:$0xff]
    %v79 = vld [vmem:[#allocation2 + $0x10] sm:$0xff]
    %v80 = vld [vmem:[#allocation2 + $0x18] sm:$0xff]
    %v81 = vld [vmem:[#allocation2 + $0x20] sm:$0xff]
    %v82 = vld [vmem:[#allocation2 + $0x28] sm:$0xff]
    %v83 = vld [vmem:[#allocation2 + $0x30] sm:$0xff]
    %v84 = vld [vmem:[#allocation2 + $0x38] sm:$0xff]
    %v85 = vld [vmem:[#allocation2 + $0x40] sm:$0xff]
    %v86 = vld [vmem:[#allocation2 + $0x48] sm:$0xff]
    %v87 = vld [vmem:[#allocation2 + $0x50] sm:$0xff]
    %v88 = vld [vmem:[#allocation2 + $0x58] sm:$0xff]
    %v89 = vld [vmem:[#allocation2 + $0x60] sm:$0xff]
    %v90 = vld [vmem:[#allocation2 + $0x68] sm:$0xff]
    %v91 = vld [vmem:[#allocation2 + $0x70] sm:$0xff]
    %v92 = vld [vmem:[#allocation2 + $0x78] sm:$0xff]
    %v93 = vld [vmem:[#allocation2 + $0x80] sm:$0xff]
    %v94 = vld [vmem:[#allocation2 + $0x88] sm:$0xff]
    %v95 = vld [vmem:[#allocation2 + $0x90] sm:$0xff]
    %v96 = vld [vmem:[#allocation2 + $0x98] sm:$0xff]
    %v97 = vld [vmem:[#allocation2 + $0xa0] sm:$0xff]
    %v98 = vld [vmem:[#allocation2 + $0xa8] sm:$0xff]
    %v99 = vld [vmem:[#allocation2 + $0xb0] sm:$0xff]
    %v100 = vld [vmem:[#allocation2 + $0xb8] sm:$0xff]
    %v101 = vld [vmem:[#allocation2 + $0xc0] sm:$0xff]
    %v102 = vld [vmem:[#allocation2 + $0xc8] sm:$0xff]
    %v103 = vld [vmem:[#allocation2 + $0xd0] sm:$0xff]
    %v104 = vld [vmem:[#allocation2 + $0xd8] sm:$0xff]
    %v105 = vld [vmem:[#allocation2 + $0xe0] sm:$0xff]
    %v106 = vld [vmem:[#allocation2 + $0xe8] sm:$0xff]
    %v107 = vld [vmem:[#allocation2 + $0xf0] sm:$0xff]
    %v108 = vld [vmem:[#allocation2 + $0xf8] sm:$0xff]
    %v109 = vld [vmem:[#allocation2 + $0x100] sm:$0xff]
    %v110 = vld [vmem:[#allocation2 + $0x108] sm:$0xff]
    %v111 = vld [vmem:[#allocation2 + $0x110] sm:$0xff]
    %v112 = vld [vmem:[#allocation2 + $0x118] sm:$0xff]
    %v113 = vld [vmem:[#allocation2 + $0x120] sm:$0xff]
    %v114 = vld [vmem:[#allocation2 + $0x128] sm:$0xff]
    %v115 = vld [vmem:[#allocation2 + $0x130] sm:$0xff]
    %v116 = vld [vmem:[#allocation2 + $0x138] sm:$0xff]
    %v117 = vld [vmem:[#allocation2 + $0x140] sm:$0xff]
    %v118 = vld [vmem:[#allocation2 + $0x148] sm:$0xff]
    %v119 = vld [vmem:[#allocation2 + $0x150] sm:$0xff]
    %v120 = vld [vmem:[#allocation2 + $0x158] sm:$0xff]
    %v121 = vld [vmem:[#allocation2 + $0x160] sm:$0xff]
    %v122 = vld [vmem:[#allocation2 + $0x168] sm:$0xff]
    %v123 = vld [vmem:[#allocation2 + $0x170] sm:$0xff]
    %v124 = vld [vmem:[#allocation2 + $0x178] sm:$0xff]
    %v125 = vld [vmem:[#allocation2 + $0x180] sm:$0xff]
    %v126 = vld [vmem:[#allocation2 + $0x188] sm:$0xff]
    %v127 = vld [vmem:[#allocation2 + $0x190] sm:$0xff]
    %v128 = vld [vmem:[#allocation2 + $0x198] sm:$0xff]
    %v129 = vld [vmem:[#allocation2 + $0x1a0] sm:$0xff]
    %v130 = vld [vmem:[#allocation2 + $0x1a8] sm:$0xff]
    %v131 = vld [vmem:[#allocation2 + $0x1b0] sm:$0xff]
    %v132 = vld [vmem:[#allocation2 + $0x1b8] sm:$0xff]
    %v133 = vld [vmem:[#allocation2 + $0x1c0] sm:$0xff]
    %v134 = vld [vmem:[#allocation2 + $0x1c8] sm:$0xff]
    %v135 = vld [vmem:[#allocation2 + $0x1d0] sm:$0xff]
    %v136 = vld [vmem:[#allocation2 + $0x1d8] sm:$0xff]
    %v137 = vld [vmem:[#allocation2 + $0x1e0] sm:$0xff]
    %v138 = vld [vmem:[#allocation2 + $0x1e8] sm:$0xff]
    %v139 = vld [vmem:[#allocation2 + $0x1f0] sm:$0xff]
    %v140 = vld [vmem:[#allocation2 + $0x1f8] sm:$0xff]
    %142 = vset.pattern.permute.xlu0 0
    %143 = vperm.xlu0 %142, %v72
    %v144 = vpop.permute.xlu0 %143
    %v148 = vunpack.c.l.b16 %v75
    %v149 = vunpack.c.h.b16 %v75
    %v150 = vunpack.c.l.b16 %v76
    %v151 = vunpack.c.h.b16 %v76
    %v152 = vpack.c.b16 %v148, %v148
    %v153 = vpack.c.b16 %v149, %v149
    %v154 = vpack.c.b16 %v150, %v150
    %v155 = vpack.c.b16 %v151, %v151
    %v224 = vunpack.c.l.b16 %v77
    %v225 = vunpack.c.h.b16 %v77
    %v226 = vunpack.c.l.b16 %v78
    %v227 = vunpack.c.h.b16 %v78
    %v228 = vunpack.c.l.b16 %v79
    %v229 = vunpack.c.h.b16 %v79
    %v230 = vunpack.c.l.b16 %v80
    %v231 = vunpack.c.h.b16 %v80
    %v232 = vunpack.c.l.b16 %v81
    %v233 = vunpack.c.h.b16 %v81
    %v234 = vunpack.c.l.b16 %v82
    %v235 = vunpack.c.h.b16 %v82
    %v236 = vunpack.c.l.b16 %v83
    %v237 = vunpack.c.h.b16 %v83
    %v238 = vunpack.c.l.b16 %v84
    %v239 = vunpack.c.h.b16 %v84
    %v240 = vunpack.c.l.b16 %v85
    %v241 = vunpack.c.h.b16 %v85
    %v242 = vunpack.c.l.b16 %v86
    %v243 = vunpack.c.h.b16 %v86
    %v244 = vunpack.c.l.b16 %v87
    %v245 = vunpack.c.h.b16 %v87
    %v246 = vunpack.c.l.b16 %v88
    %v247 = vunpack.c.h.b16 %v88
    %v248 = vunpack.c.l.b16 %v89
    %v249 = vunpack.c.h.b16 %v89
    %v250 = vunpack.c.l.b16 %v90
    %v251 = vunpack.c.h.b16 %v90
    %v252 = vunpack.c.l.b16 %v91
    %v253 = vunpack.c.h.b16 %v91
    %v254 = vunpack.c.l.b16 %v92
    %v255 = vunpack.c.h.b16 %v92
    %v256 = vunpack.c.l.b16 %v93
    %v257 = vunpack.c.h.b16 %v93
    %v258 = vunpack.c.l.b16 %v94
    %v259 = vunpack.c.h.b16 %v94
    %v260 = vunpack.c.l.b16 %v95
    %v261 = vunpack.c.h.b16 %v95
    %v262 = vunpack.c.l.b16 %v96
    %v263 = vunpack.c.h.b16 %v96
    %v264 = vunpack.c.l.b16 %v97
    %v265 = vunpack.c.h.b16 %v97
    %v266 = vunpack.c.l.b16 %v98
    %v267 = vunpack.c.h.b16 %v98
    %v268 = vunpack.c.l.b16 %v99
    %v269 = vunpack.c.h.b16 %v99
    %v270 = vunpack.c.l.b16 %v100
    %v271 = vunpack.c.h.b16 %v100
    %v272 = vunpack.c.l.b16 %v101
    %v273 = vunpack.c.h.b16 %v101
    %v274 = vunpack.c.l.b16 %v102
    %v275 = vunpack.c.h.b16 %v102
    %v276 = vunpack.c.l.b16 %v103
    %v277 = vunpack.c.h.b16 %v103
    %v278 = vunpack.c.l.b16 %v104
    %v279 = vunpack.c.h.b16 %v104
    %v280 = vunpack.c.l.b16 %v105
    %v281 = vunpack.c.h.b16 %v105
    %v282 = vunpack.c.l.b16 %v106
    %v283 = vunpack.c.h.b16 %v106
    %v284 = vunpack.c.l.b16 %v107
    %v285 = vunpack.c.h.b16 %v107
    %v286 = vunpack.c.l.b16 %v108
    %v287 = vunpack.c.h.b16 %v108
    %v288 = vunpack.c.l.b16 %v109
    %v289 = vunpack.c.h.b16 %v109
    %v290 = vunpack.c.l.b16 %v110
    %v291 = vunpack.c.h.b16 %v110
    %v292 = vunpack.c.l.b16 %v111
    %v293 = vunpack.c.h.b16 %v111
    %v294 = vunpack.c.l.b16 %v112
    %v295 = vunpack.c.h.b16 %v112
    %v296 = vunpack.c.l.b16 %v113
    %v297 = vunpack.c.h.b16 %v113
    %v298 = vunpack.c.l.b16 %v114
    %v299 = vunpack.c.h.b16 %v114
    %v300 = vunpack.c.l.b16 %v115
    %v301 = vunpack.c.h.b16 %v115
    %v302 = vunpack.c.l.b16 %v116
    %v303 = vunpack.c.h.b16 %v116
    %v304 = vunpack.c.l.b16 %v117
    %v305 = vunpack.c.h.b16 %v117
    %v306 = vunpack.c.l.b16 %v118
    %v307 = vunpack.c.h.b16 %v118
    %v308 = vunpack.c.l.b16 %v119
    %v309 = vunpack.c.h.b16 %v119
    %v310 = vunpack.c.l.b16 %v120
    %v311 = vunpack.c.h.b16 %v120
    %v312 = vunpack.c.l.b16 %v121
    %v313 = vunpack.c.h.b16 %v121
    %v314 = vunpack.c.l.b16 %v122
    %v315 = vunpack.c.h.b16 %v122
    %v316 = vunpack.c.l.b16 %v123
    %v317 = vunpack.c.h.b16 %v123
    %v318 = vunpack.c.l.b16 %v124
    %v319 = vunpack.c.h.b16 %v124
    %v320 = vunpack.c.l.b16 %v125
    %v321 = vunpack.c.h.b16 %v125
    %v322 = vunpack.c.l.b16 %v126
    %v323 = vunpack.c.h.b16 %v126
    %v324 = vunpack.c.l.b16 %v127
    %v325 = vunpack.c.h.b16 %v127
    %v326 = vunpack.c.l.b16 %v128
    %v327 = vunpack.c.h.b16 %v128
    %v328 = vunpack.c.l.b16 %v129
    %v329 = vunpack.c.h.b16 %v129
    %v330 = vunpack.c.l.b16 %v130
    %v331 = vunpack.c.h.b16 %v130
    %v332 = vunpack.c.l.b16 %v131
    %v333 = vunpack.c.h.b16 %v131
    %v334 = vunpack.c.l.b16 %v132
    %v335 = vunpack.c.h.b16 %v132
    %v336 = vunpack.c.l.b16 %v133
    %v337 = vunpack.c.h.b16 %v133
    %v338 = vunpack.c.l.b16 %v134
    %v339 = vunpack.c.h.b16 %v134
    %v340 = vunpack.c.l.b16 %v135
    %v341 = vunpack.c.h.b16 %v135
    %v342 = vunpack.c.l.b16 %v136
    %v343 = vunpack.c.h.b16 %v136
    %v344 = vunpack.c.l.b16 %v137
    %v345 = vunpack.c.h.b16 %v137
    %v346 = vunpack.c.l.b16 %v138
    %v347 = vunpack.c.h.b16 %v138
    %v348 = vunpack.c.l.b16 %v139
    %v349 = vunpack.c.h.b16 %v139
    %v350 = vunpack.c.l.b16 %v140
    %v351 = vunpack.c.h.b16 %v140
    %v352 = vpack.c.b16 %v226, %v224
    %v353 = vpack.c.b16 %v227, %v225
    %v354 = vpack.c.b16 %v230, %v228
    %v355 = vpack.c.b16 %v231, %v229
    %v356 = vpack.c.b16 %v234, %v232
    %v357 = vpack.c.b16 %v235, %v233
    %v358 = vpack.c.b16 %v238, %v236
    %v359 = vpack.c.b16 %v239, %v237
    %v360 = vpack.c.b16 %v242, %v240
    %v361 = vpack.c.b16 %v243, %v241
    %v362 = vpack.c.b16 %v246, %v244
    %v363 = vpack.c.b16 %v247, %v245
    %v364 = vpack.c.b16 %v250, %v248
    %v365 = vpack.c.b16 %v251, %v249
    %v366 = vpack.c.b16 %v254, %v252
    %v367 = vpack.c.b16 %v255, %v253
    %v368 = vpack.c.b16 %v258, %v256
    %v369 = vpack.c.b16 %v259, %v257
    %v370 = vpack.c.b16 %v262, %v260
    %v371 = vpack.c.b16 %v263, %v261
    %v372 = vpack.c.b16 %v266, %v264
    %v373 = vpack.c.b16 %v267, %v265
    %v374 = vpack.c.b16 %v270, %v268
    %v375 = vpack.c.b16 %v271, %v269
    %v376 = vpack.c.b16 %v274, %v272
    %v377 = vpack.c.b16 %v275, %v273
    %v378 = vpack.c.b16 %v278, %v276
    %v379 = vpack.c.b16 %v279, %v277
    %v380 = vpack.c.b16 %v282, %v280
    %v381 = vpack.c.b16 %v283, %v281
    %v382 = vpack.c.b16 %v286, %v284
    %v383 = vpack.c.b16 %v287, %v285
    %v384 = vpack.c.b16 %v290, %v288
    %v385 = vpack.c.b16 %v291, %v289
    %v386 = vpack.c.b16 %v294, %v292
    %v387 = vpack.c.b16 %v295, %v293
    %v388 = vpack.c.b16 %v298, %v296
    %v389 = vpack.c.b16 %v299, %v297
    %v390 = vpack.c.b16 %v302, %v300
    %v391 = vpack.c.b16 %v303, %v301
    %v392 = vpack.c.b16 %v306, %v304
    %v393 = vpack.c.b16 %v307, %v305
    %v394 = vpack.c.b16 %v310, %v308
    %v395 = vpack.c.b16 %v311, %v309
    %v396 = vpack.c.b16 %v314, %v312
    %v397 = vpack.c.b16 %v315, %v313
    %v398 = vpack.c.b16 %v318, %v316
    %v399 = vpack.c.b16 %v319, %v317
    %v400 = vpack.c.b16 %v322, %v320
    %v401 = vpack.c.b16 %v323, %v321
    %v402 = vpack.c.b16 %v326, %v324
    %v403 = vpack.c.b16 %v327, %v325
    %v404 = vpack.c.b16 %v330, %v328
    %v405 = vpack.c.b16 %v331, %v329
    %v406 = vpack.c.b16 %v334, %v332
    %v407 = vpack.c.b16 %v335, %v333
    %v408 = vpack.c.b16 %v338, %v336
    %v409 = vpack.c.b16 %v339, %v337
    %v410 = vpack.c.b16 %v342, %v340
    %v411 = vpack.c.b16 %v343, %v341
    %v412 = vpack.c.b16 %v346, %v344
    %v413 = vpack.c.b16 %v347, %v345
    %v414 = vpack.c.b16 %v350, %v348
    %v415 = vpack.c.b16 %v351, %v349
    %480 = vmatprep.subr.bf16.mxu0 %v367
    %481 = vmatpush1.bf16.msra.mxu0 %v366
    %482 = vmatprep.subr.bf16.mxu0 %v365
    %483 = vmatpush1.bf16.msra.mxu0 %v364
    %484 = vmatprep.subr.bf16.mxu0 %v363
    %485 = vmatpush1.bf16.msra.mxu0 %v362
    %486 = vmatprep.subr.bf16.mxu0 %v361
    %487 = vmatpush1.bf16.msra.mxu0 %v360
    %488 = vmatprep.subr.bf16.mxu0 %v359
    %489 = vmatpush1.bf16.msra.mxu0 %v358
    %490 = vmatprep.subr.bf16.mxu0 %v357
    %491 = vmatpush1.bf16.msra.mxu0 %v356
    %492 = vmatprep.subr.bf16.mxu0 %v355
    %493 = vmatpush1.bf16.msra.mxu0 %v354
    %494 = vmatprep.subr.bf16.mxu0 %v353
    %495 = vmatpush1.bf16.msra.mxu0 %v352
    %496 = vmatprep.subr.bf16.mxu0 %v383
    %497 = vmatpush2.bf16.msra.mxu0 %v382
    %498 = vmatprep.subr.bf16.mxu0 %v381
    %499 = vmatpush2.bf16.msra.mxu0 %v380
    %500 = vmatprep.subr.bf16.mxu0 %v379
    %501 = vmatpush2.bf16.msra.mxu0 %v378
    %502 = vmatprep.subr.bf16.mxu0 %v377
    %503 = vmatpush2.bf16.msra.mxu0 %v376
    %504 = vmatprep.subr.bf16.mxu0 %v375
    %505 = vmatpush2.bf16.msra.mxu0 %v374
    %506 = vmatprep.subr.bf16.mxu0 %v373
    %507 = vmatpush2.bf16.msra.mxu0 %v372
    %508 = vmatprep.subr.bf16.mxu0 %v371
    %509 = vmatpush2.bf16.msra.mxu0 %v370
    %510 = vmatprep.subr.bf16.mxu0 %v369
    %511 = vmatpush2.bf16.msra.mxu0 %v368
    %512 = vmatprep.mubr.bf16.mxu0 %v153
    %513 = vmatmul.mubr.bf16.gmra.mxu0 %v152
    %v514 = vpop.f32.mrf.mxu0
    %v515 = vadd.f32 %v144, %v514
    %v516 = vpop.f32.mrf.mxu0
    %v517 = vadd.f32 %v144, %v516
    %v518 = vpop.f32.mrf.mxu0
    %v519 = vpop.f32.mrf.mxu0
    %520 = vdwg.mxu0
    %521 = vmatprep.subr.bf16.mxu0 %v399
    %522 = vmatpush1.bf16.msra.mxu0 %v398
    %523 = vmatprep.subr.bf16.mxu0 %v397
    %524 = vmatpush1.bf16.msra.mxu0 %v396
    %525 = vmatprep.subr.bf16.mxu0 %v395
    %526 = vmatpush1.bf16.msra.mxu0 %v394
    %527 = vmatprep.subr.bf16.mxu0 %v393
    %528 = vmatpush1.bf16.msra.mxu0 %v392
    %529 = vmatprep.subr.bf16.mxu0 %v391
    %530 = vmatpush1.bf16.msra.mxu0 %v390
    %531 = vmatprep.subr.bf16.mxu0 %v389
    %532 = vmatpush1.bf16.msra.mxu0 %v388
    %533 = vmatprep.subr.bf16.mxu0 %v387
    %534 = vmatpush1.bf16.msra.mxu0 %v386
    %535 = vmatprep.subr.bf16.mxu0 %v385
    %536 = vmatpush1.bf16.msra.mxu0 %v384
    %537 = vmatprep.subr.bf16.mxu0 %v415
    %538 = vmatpush2.bf16.msra.mxu0 %v414
    %539 = vmatprep.subr.bf16.mxu0 %v413
    %540 = vmatpush2.bf16.msra.mxu0 %v412
    %541 = vmatprep.subr.bf16.mxu0 %v411
    %542 = vmatpush2.bf16.msra.mxu0 %v410
    %543 = vmatprep.subr.bf16.mxu0 %v409
    %544 = vmatpush2.bf16.msra.mxu0 %v408
    %545 = vmatprep.subr.bf16.mxu0 %v407
    %546 = vmatpush2.bf16.msra.mxu0 %v406
    %547 = vmatprep.subr.bf16.mxu0 %v405
    %548 = vmatpush2.bf16.msra.mxu0 %v404
    %549 = vmatprep.subr.bf16.mxu0 %v403
    %550 = vmatpush2.bf16.msra.mxu0 %v402
    %551 = vmatprep.subr.bf16.mxu0 %v401
    %552 = vmatpush2.bf16.msra.mxu0 %v400
    %553 = vmatprep.mubr.bf16.mxu0 %v155
    %554 = vmatmul.mubr.bf16.gmra.mxu0 %v154
    %v555 = vpop.f32.mrf.mxu0
    %v556 = vadd.f32 %v515, %v555
    %v557 = vpop.f32.mrf.mxu0
    %v558 = vadd.f32 %v517, %v557
    %v559 = vpop.f32.mrf.mxu0
    %v560 = vpop.f32.mrf.mxu0
    %561 = vdwg.mxu0
    %vm562 = vcmp.gt.f32.partialorder %v556, 0.0
    %vm563 = vcmp.gt.f32.partialorder %v558, 0.0
    %v564 = vmin.f32 %v556, 0.0
    %v565 = vmin.f32 %v558, 0.0
    %v566 = vmul.f32 %v564, 1.442695
    %v567 = vpow.pop %v566
    %v568 = vmul.f32 %v565, 1.442695
    %v569 = vpow.pop %v568
    %v570 = vsub.f32 %v567, 1.0
    %v571 = vsub.f32 %v569, 1.0
    %v572 = vsel %vm562, %v556, %v570
    %v573 = vsel %vm563, %v558, %v571
    %v574 = vld [vmem:[#allocation7] sm:$0xff]
    %v575 = vld [vmem:[#allocation7 + $0x8] sm:$0xff]
    %576 = vmatprep.subr.mxu0 0.0
    %577 = vmatpush1.xpose.msra.mxu0 0.0
    %578 = vmatprep.subr.mxu0 0.0
    %579 = vmatpush1.xpose.msra.mxu0 0.0
    %580 = vmatprep.subr.mxu0 0.0
    %581 = vmatpush1.xpose.msra.mxu0 0.0
    %582 = vmatprep.subr.mxu0 0.0
    %583 = vmatpush1.xpose.msra.mxu0 0.0
    %584 = vmatprep.subr.mxu0 0.0
    %585 = vmatpush1.xpose.msra.mxu0 0.0
    %586 = vmatprep.subr.mxu0 0.0
    %587 = vmatpush1.xpose.msra.mxu0 0.0
    %588 = vmatprep.subr.mxu0 0.0
    %589 = vmatpush1.xpose.msra.mxu0 0.0
    %590 = vmatprep.subr.mxu0 0.0
    %591 = vmatpush1.xpose.msra.mxu0 0.0
    %592 = vmatprep.subr.mxu0 0.0
    %593 = vmatpush1.xpose.msra.mxu0 0.0
    %594 = vmatprep.subr.mxu0 0.0
    %595 = vmatpush1.xpose.msra.mxu0 0.0
    %596 = vmatprep.subr.mxu0 0.0
    %597 = vmatpush1.xpose.msra.mxu0 0.0
    %598 = vmatprep.subr.mxu0 0.0
    %599 = vmatpush1.xpose.msra.mxu0 0.0
    %600 = vmatprep.subr.mxu0 0.0
    %601 = vmatpush1.xpose.msra.mxu0 0.0
    %602 = vmatprep.subr.mxu0 0.0
    %603 = vmatpush1.xpose.msra.mxu0 0.0
    %604 = vmatprep.subr.mxu0 0.0
    %605 = vmatpush1.xpose.msra.mxu0 %v575
    %606 = vmatprep.subr.mxu0 0.0
    %607 = vmatpush1.xpose.msra.mxu0 %v574
    %608 = vmatprep.subr.mxu0 0.0
    %609 = vmatpush2.xpose.msra.mxu0 0.0
    %610 = vmatprep.subr.mxu0 0.0
    %611 = vmatpush2.xpose.msra.mxu0 0.0
    %612 = vmatprep.subr.mxu0 0.0
    %613 = vmatpush2.xpose.msra.mxu0 0.0
    %614 = vmatprep.subr.mxu0 0.0
    %615 = vmatpush2.xpose.msra.mxu0 0.0
    %616 = vmatprep.subr.mxu0 0.0
    %617 = vmatpush2.xpose.msra.mxu0 0.0
    %618 = vmatprep.subr.mxu0 0.0
    %619 = vmatpush2.xpose.msra.mxu0 0.0
    %620 = vmatprep.subr.mxu0 0.0
    %621 = vmatpush2.xpose.msra.mxu0 0.0
    %622 = vmatprep.subr.mxu0 0.0
    %623 = vmatpush2.xpose.msra.mxu0 0.0
    %624 = vmatprep.subr.mxu0 0.0
    %625 = vmatpush2.xpose.msra.mxu0 0.0
    %626 = vmatprep.subr.mxu0 0.0
    %627 = vmatpush2.xpose.msra.mxu0 0.0
    %628 = vmatprep.subr.mxu0 0.0
    %629 = vmatpush2.xpose.msra.mxu0 0.0
    %630 = vmatprep.subr.mxu0 0.0
    %631 = vmatpush2.xpose.msra.mxu0 0.0
    %632 = vmatprep.subr.mxu0 0.0
    %633 = vmatpush2.xpose.msra.mxu0 0.0
    %634 = vmatprep.subr.mxu0 0.0
    %635 = vmatpush2.xpose.msra.mxu0 0.0
    %636 = vmatprep.subr.mxu0 0.0
    %637 = vmatpush2.xpose.msra.mxu0 0.0
    %638 = vmatprep.subr.mxu0 0.0
    %639 = vmatpush2.xpose.msra.mxu0 0.0
    %640 = vmatprep.mubr.f32.mxu0 0.0
    %641 = vmatmul.mubr.f32.gmra.mxu0 %v572
    %v642 = vpop.f32.mrf.mxu0
    %v643 = vadd.f32 0.0, %v642
    %v644 = vpop.f32.mrf.mxu0
    %645 = vdwg.mxu0
    %s646 = scalar_lea.vmem [#allocation7], 16
    %v647 = vld [vmem:[%s646] sm:$0xff]
    %v648 = vld [vmem:[%s646 + $0x8] sm:$0xff]
    %v650 = vrot.slane %v572, 1
    %652 = vmatprep.subr.mxu0 0.0
    %653 = vmatpush1.xpose.msra.mxu0 0.0
    %654 = vmatprep.subr.mxu0 0.0
    %655 = vmatpush1.xpose.msra.mxu0 0.0
    %656 = vmatprep.subr.mxu0 0.0
    %657 = vmatpush1.xpose.msra.mxu0 0.0
    %658 = vmatprep.subr.mxu0 0.0
    %659 = vmatpush1.xpose.msra.mxu0 0.0
    %660 = vmatprep.subr.mxu0 0.0
    %661 = vmatpush1.xpose.msra.mxu0 0.0
    %662 = vmatprep.subr.mxu0 0.0
    %663 = vmatpush1.xpose.msra.mxu0 0.0
    %664 = vmatprep.subr.mxu0 0.0
    %665 = vmatpush1.xpose.msra.mxu0 0.0
    %666 = vmatprep.subr.mxu0 0.0
    %667 = vmatpush1.xpose.msra.mxu0 0.0
    %668 = vmatprep.subr.mxu0 0.0
    %669 = vmatpush1.xpose.msra.mxu0 0.0
    %670 = vmatprep.subr.mxu0 0.0
    %671 = vmatpush1.xpose.msra.mxu0 0.0
    %672 = vmatprep.subr.mxu0 0.0
    %673 = vmatpush1.xpose.msra.mxu0 0.0
    %674 = vmatprep.subr.mxu0 0.0
    %675 = vmatpush1.xpose.msra.mxu0 0.0
    %676 = vmatprep.subr.mxu0 0.0
    %677 = vmatpush1.xpose.msra.mxu0 0.0
    %678 = vmatprep.subr.mxu0 0.0
    %679 = vmatpush1.xpose.msra.mxu0 0.0
    %680 = vmatprep.subr.mxu0 0.0
    %681 = vmatpush1.xpose.msra.mxu0 %v648
    %682 = vmatprep.subr.mxu0 0.0
    %683 = vmatpush1.xpose.msra.mxu0 %v647
    %684 = vmatprep.subr.mxu0 0.0
    %685 = vmatpush2.xpose.msra.mxu0 0.0
    %686 = vmatprep.subr.mxu0 0.0
    %687 = vmatpush2.xpose.msra.mxu0 0.0
    %688 = vmatprep.subr.mxu0 0.0
    %689 = vmatpush2.xpose.msra.mxu0 0.0
    %690 = vmatprep.subr.mxu0 0.0
    %691 = vmatpush2.xpose.msra.mxu0 0.0
    %692 = vmatprep.subr.mxu0 0.0
    %693 = vmatpush2.xpose.msra.mxu0 0.0
    %694 = vmatprep.subr.mxu0 0.0
    %695 = vmatpush2.xpose.msra.mxu0 0.0
    %696 = vmatprep.subr.mxu0 0.0
    %697 = vmatpush2.xpose.msra.mxu0 0.0
    %698 = vmatprep.subr.mxu0 0.0
    %699 = vmatpush2.xpose.msra.mxu0 0.0
    %700 = vmatprep.subr.mxu0 0.0
    %701 = vmatpush2.xpose.msra.mxu0 0.0
    %702 = vmatprep.subr.mxu0 0.0
    %703 = vmatpush2.xpose.msra.mxu0 0.0
    %704 = vmatprep.subr.mxu0 0.0
    %705 = vmatpush2.xpose.msra.mxu0 0.0
    %706 = vmatprep.subr.mxu0 0.0
    %707 = vmatpush2.xpose.msra.mxu0 0.0
    %708 = vmatprep.subr.mxu0 0.0
    %709 = vmatpush2.xpose.msra.mxu0 0.0
    %710 = vmatprep.subr.mxu0 0.0
    %711 = vmatpush2.xpose.msra.mxu0 0.0
    %712 = vmatprep.subr.mxu0 0.0
    %713 = vmatpush2.xpose.msra.mxu0 0.0
    %714 = vmatprep.subr.mxu0 0.0
    %715 = vmatpush2.xpose.msra.mxu0 0.0
    %716 = vmatprep.mubr.f32.mxu0 0.0
    %717 = vmatmul.mubr.f32.gmra.mxu0 %v650
    %v718 = vpop.f32.mrf.mxu0
    %v719 = vadd.f32 0.0, %v718
    %v720 = vpop.f32.mrf.mxu0
    %721 = vdwg.mxu0
    %s722 = scalar_lea.vmem [#allocation7], 32
    %v723 = vld [vmem:[%s722] sm:$0xff]
    %v724 = vld [vmem:[%s722 + $0x8] sm:$0xff]
    %v725 = vrot.slane %v572, 2
    %727 = vmatprep.subr.mxu0 0.0
    %728 = vmatpush1.xpose.msra.mxu0 0.0
    %729 = vmatprep.subr.mxu0 0.0
    %730 = vmatpush1.xpose.msra.mxu0 0.0
    %731 = vmatprep.subr.mxu0 0.0
    %732 = vmatpush1.xpose.msra.mxu0 0.0
    %733 = vmatprep.subr.mxu0 0.0
    %734 = vmatpush1.xpose.msra.mxu0 0.0
    %735 = vmatprep.subr.mxu0 0.0
    %736 = vmatpush1.xpose.msra.mxu0 0.0
    %737 = vmatprep.subr.mxu0 0.0
    %738 = vmatpush1.xpose.msra.mxu0 0.0
    %739 = vmatprep.subr.mxu0 0.0
    %740 = vmatpush1.xpose.msra.mxu0 0.0
    %741 = vmatprep.subr.mxu0 0.0
    %742 = vmatpush1.xpose.msra.mxu0 0.0
    %743 = vmatprep.subr.mxu0 0.0
    %744 = vmatpush1.xpose.msra.mxu0 0.0
    %745 = vmatprep.subr.mxu0 0.0
    %746 = vmatpush1.xpose.msra.mxu0 0.0
    %747 = vmatprep.subr.mxu0 0.0
    %748 = vmatpush1.xpose.msra.mxu0 0.0
    %749 = vmatprep.subr.mxu0 0.0
    %750 = vmatpush1.xpose.msra.mxu0 0.0
    %751 = vmatprep.subr.mxu0 0.0
    %752 = vmatpush1.xpose.msra.mxu0 0.0
    %753 = vmatprep.subr.mxu0 0.0
    %754 = vmatpush1.xpose.msra.mxu0 0.0
    %755 = vmatprep.subr.mxu0 0.0
    %756 = vmatpush1.xpose.msra.mxu0 %v724
    %757 = vmatprep.subr.mxu0 0.0
    %758 = vmatpush1.xpose.msra.mxu0 %v723
    %759 = vmatprep.subr.mxu0 0.0
    %760 = vmatpush2.xpose.msra.mxu0 0.0
    %761 = vmatprep.subr.mxu0 0.0
    %762 = vmatpush2.xpose.msra.mxu0 0.0
    %763 = vmatprep.subr.mxu0 0.0
    %764 = vmatpush2.xpose.msra.mxu0 0.0
    %765 = vmatprep.subr.mxu0 0.0
    %766 = vmatpush2.xpose.msra.mxu0 0.0
    %767 = vmatprep.subr.mxu0 0.0
    %768 = vmatpush2.xpose.msra.mxu0 0.0
    %769 = vmatprep.subr.mxu0 0.0
    %770 = vmatpush2.xpose.msra.mxu0 0.0
    %771 = vmatprep.subr.mxu0 0.0
    %772 = vmatpush2.xpose.msra.mxu0 0.0
    %773 = vmatprep.subr.mxu0 0.0
    %774 = vmatpush2.xpose.msra.mxu0 0.0
    %775 = vmatprep.subr.mxu0 0.0
    %776 = vmatpush2.xpose.msra.mxu0 0.0
    %777 = vmatprep.subr.mxu0 0.0
    %778 = vmatpush2.xpose.msra.mxu0 0.0
    %779 = vmatprep.subr.mxu0 0.0
    %780 = vmatpush2.xpose.msra.mxu0 0.0
    %781 = vmatprep.subr.mxu0 0.0
    %782 = vmatpush2.xpose.msra.mxu0 0.0
    %783 = vmatprep.subr.mxu0 0.0
    %784 = vmatpush2.xpose.msra.mxu0 0.0
    %785 = vmatprep.subr.mxu0 0.0
    %786 = vmatpush2.xpose.msra.mxu0 0.0
    %787 = vmatprep.subr.mxu0 0.0
    %788 = vmatpush2.xpose.msra.mxu0 0.0
    %789 = vmatprep.subr.mxu0 0.0
    %790 = vmatpush2.xpose.msra.mxu0 0.0
    %791 = vmatprep.mubr.f32.mxu0 0.0
    %792 = vmatmul.mubr.f32.gmra.mxu0 %v725
    %v793 = vpop.f32.mrf.mxu0
    %v794 = vadd.f32 0.0, %v793
    %v795 = vpop.f32.mrf.mxu0
    %796 = vdwg.mxu0
    %s797 = scalar_lea.vmem [#allocation7], 48
    %v798 = vld [vmem:[%s797] sm:$0xff]
    %v799 = vld [vmem:[%s797 + $0x8] sm:$0xff]
    %v800 = vrot.slane %v572, 3
    %802 = vmatprep.subr.mxu0 0.0
    %803 = vmatpush1.xpose.msra.mxu0 0.0
    %804 = vmatprep.subr.mxu0 0.0
    %805 = vmatpush1.xpose.msra.mxu0 0.0
    %806 = vmatprep.subr.mxu0 0.0
    %807 = vmatpush1.xpose.msra.mxu0 0.0
    %808 = vmatprep.subr.mxu0 0.0
    %809 = vmatpush1.xpose.msra.mxu0 0.0
    %810 = vmatprep.subr.mxu0 0.0
    %811 = vmatpush1.xpose.msra.mxu0 0.0
    %812 = vmatprep.subr.mxu0 0.0
    %813 = vmatpush1.xpose.msra.mxu0 0.0
    %814 = vmatprep.subr.mxu0 0.0
    %815 = vmatpush1.xpose.msra.mxu0 0.0
    %816 = vmatprep.subr.mxu0 0.0
    %817 = vmatpush1.xpose.msra.mxu0 0.0
    %818 = vmatprep.subr.mxu0 0.0
    %819 = vmatpush1.xpose.msra.mxu0 0.0
    %820 = vmatprep.subr.mxu0 0.0
    %821 = vmatpush1.xpose.msra.mxu0 0.0
    %822 = vmatprep.subr.mxu0 0.0
    %823 = vmatpush1.xpose.msra.mxu0 0.0
    %824 = vmatprep.subr.mxu0 0.0
    %825 = vmatpush1.xpose.msra.mxu0 0.0
    %826 = vmatprep.subr.mxu0 0.0
    %827 = vmatpush1.xpose.msra.mxu0 0.0
    %828 = vmatprep.subr.mxu0 0.0
    %829 = vmatpush1.xpose.msra.mxu0 0.0
    %830 = vmatprep.subr.mxu0 0.0
    %831 = vmatpush1.xpose.msra.mxu0 %v799
    %832 = vmatprep.subr.mxu0 0.0
    %833 = vmatpush1.xpose.msra.mxu0 %v798
    %834 = vmatprep.subr.mxu0 0.0
    %835 = vmatpush2.xpose.msra.mxu0 0.0
    %836 = vmatprep.subr.mxu0 0.0
    %837 = vmatpush2.xpose.msra.mxu0 0.0
    %838 = vmatprep.subr.mxu0 0.0
    %839 = vmatpush2.xpose.msra.mxu0 0.0
    %840 = vmatprep.subr.mxu0 0.0
    %841 = vmatpush2.xpose.msra.mxu0 0.0
    %842 = vmatprep.subr.mxu0 0.0
    %843 = vmatpush2.xpose.msra.mxu0 0.0
    %844 = vmatprep.subr.mxu0 0.0
    %845 = vmatpush2.xpose.msra.mxu0 0.0
    %846 = vmatprep.subr.mxu0 0.0
    %847 = vmatpush2.xpose.msra.mxu0 0.0
    %848 = vmatprep.subr.mxu0 0.0
    %849 = vmatpush2.xpose.msra.mxu0 0.0
    %850 = vmatprep.subr.mxu0 0.0
    %851 = vmatpush2.xpose.msra.mxu0 0.0
    %852 = vmatprep.subr.mxu0 0.0
    %853 = vmatpush2.xpose.msra.mxu0 0.0
    %854 = vmatprep.subr.mxu0 0.0
    %855 = vmatpush2.xpose.msra.mxu0 0.0
    %856 = vmatprep.subr.mxu0 0.0
    %857 = vmatpush2.xpose.msra.mxu0 0.0
    %858 = vmatprep.subr.mxu0 0.0
    %859 = vmatpush2.xpose.msra.mxu0 0.0
    %860 = vmatprep.subr.mxu0 0.0
    %861 = vmatpush2.xpose.msra.mxu0 0.0
    %862 = vmatprep.subr.mxu0 0.0
    %863 = vmatpush2.xpose.msra.mxu0 0.0
    %864 = vmatprep.subr.mxu0 0.0
    %865 = vmatpush2.xpose.msra.mxu0 0.0
    %866 = vmatprep.mubr.f32.mxu0 0.0
    %867 = vmatmul.mubr.f32.gmra.mxu0 %v800
    %v868 = vpop.f32.mrf.mxu0
    %v869 = vadd.f32 0.0, %v868
    %v870 = vpop.f32.mrf.mxu0
    %871 = vdwg.mxu0
    %s872 = scalar_lea.vmem [#allocation7], 64
    %v873 = vld [vmem:[%s872] sm:$0xff]
    %v874 = vld [vmem:[%s872 + $0x8] sm:$0xff]
    %v875 = vrot.slane %v572, 4
    %877 = vmatprep.subr.mxu0 0.0
    %878 = vmatpush1.xpose.msra.mxu0 0.0
    %879 = vmatprep.subr.mxu0 0.0
    %880 = vmatpush1.xpose.msra.mxu0 0.0
    %881 = vmatprep.subr.mxu0 0.0
    %882 = vmatpush1.xpose.msra.mxu0 0.0
    %883 = vmatprep.subr.mxu0 0.0
    %884 = vmatpush1.xpose.msra.mxu0 0.0
    %885 = vmatprep.subr.mxu0 0.0
    %886 = vmatpush1.xpose.msra.mxu0 0.0
    %887 = vmatprep.subr.mxu0 0.0
    %888 = vmatpush1.xpose.msra.mxu0 0.0
    %889 = vmatprep.subr.mxu0 0.0
    %890 = vmatpush1.xpose.msra.mxu0 0.0
    %891 = vmatprep.subr.mxu0 0.0
    %892 = vmatpush1.xpose.msra.mxu0 0.0
    %893 = vmatprep.subr.mxu0 0.0
    %894 = vmatpush1.xpose.msra.mxu0 0.0
    %895 = vmatprep.subr.mxu0 0.0
    %896 = vmatpush1.xpose.msra.mxu0 0.0
    %897 = vmatprep.subr.mxu0 0.0
    %898 = vmatpush1.xpose.msra.mxu0 0.0
    %899 = vmatprep.subr.mxu0 0.0
    %900 = vmatpush1.xpose.msra.mxu0 0.0
    %901 = vmatprep.subr.mxu0 0.0
    %902 = vmatpush1.xpose.msra.mxu0 0.0
    %903 = vmatprep.subr.mxu0 0.0
    %904 = vmatpush1.xpose.msra.mxu0 0.0
    %905 = vmatprep.subr.mxu0 0.0
    %906 = vmatpush1.xpose.msra.mxu0 %v874
    %907 = vmatprep.subr.mxu0 0.0
    %908 = vmatpush1.xpose.msra.mxu0 %v873
    %909 = vmatprep.subr.mxu0 0.0
    %910 = vmatpush2.xpose.msra.mxu0 0.0
    %911 = vmatprep.subr.mxu0 0.0
    %912 = vmatpush2.xpose.msra.mxu0 0.0
    %913 = vmatprep.subr.mxu0 0.0
    %914 = vmatpush2.xpose.msra.mxu0 0.0
    %915 = vmatprep.subr.mxu0 0.0
    %916 = vmatpush2.xpose.msra.mxu0 0.0
    %917 = vmatprep.subr.mxu0 0.0
    %918 = vmatpush2.xpose.msra.mxu0 0.0
    %919 = vmatprep.subr.mxu0 0.0
    %920 = vmatpush2.xpose.msra.mxu0 0.0
    %921 = vmatprep.subr.mxu0 0.0
    %922 = vmatpush2.xpose.msra.mxu0 0.0
    %923 = vmatprep.subr.mxu0 0.0
    %924 = vmatpush2.xpose.msra.mxu0 0.0
    %925 = vmatprep.subr.mxu0 0.0
    %926 = vmatpush2.xpose.msra.mxu0 0.0
    %927 = vmatprep.subr.mxu0 0.0
    %928 = vmatpush2.xpose.msra.mxu0 0.0
    %929 = vmatprep.subr.mxu0 0.0
    %930 = vmatpush2.xpose.msra.mxu0 0.0
    %931 = vmatprep.subr.mxu0 0.0
    %932 = vmatpush2.xpose.msra.mxu0 0.0
    %933 = vmatprep.subr.mxu0 0.0
    %934 = vmatpush2.xpose.msra.mxu0 0.0
    %935 = vmatprep.subr.mxu0 0.0
    %936 = vmatpush2.xpose.msra.mxu0 0.0
    %937 = vmatprep.subr.mxu0 0.0
    %938 = vmatpush2.xpose.msra.mxu0 0.0
    %939 = vmatprep.subr.mxu0 0.0
    %940 = vmatpush2.xpose.msra.mxu0 0.0
    %941 = vmatprep.mubr.f32.mxu0 0.0
    %942 = vmatmul.mubr.f32.gmra.mxu0 %v875
    %v943 = vpop.f32.mrf.mxu0
    %v944 = vadd.f32 0.0, %v943
    %v945 = vpop.f32.mrf.mxu0
    %946 = vdwg.mxu0
    %s947 = scalar_lea.vmem [#allocation7], 80
    %v948 = vld [vmem:[%s947] sm:$0xff]
    %v949 = vld [vmem:[%s947 + $0x8] sm:$0xff]
    %v950 = vrot.slane %v572, 5
    %952 = vmatprep.subr.mxu0 0.0
    %953 = vmatpush1.xpose.msra.mxu0 0.0
    %954 = vmatprep.subr.mxu0 0.0
    %955 = vmatpush1.xpose.msra.mxu0 0.0
    %956 = vmatprep.subr.mxu0 0.0
    %957 = vmatpush1.xpose.msra.mxu0 0.0
    %958 = vmatprep.subr.mxu0 0.0
    %959 = vmatpush1.xpose.msra.mxu0 0.0
    %960 = vmatprep.subr.mxu0 0.0
    %961 = vmatpush1.xpose.msra.mxu0 0.0
    %962 = vmatprep.subr.mxu0 0.0
    %963 = vmatpush1.xpose.msra.mxu0 0.0
    %964 = vmatprep.subr.mxu0 0.0
    %965 = vmatpush1.xpose.msra.mxu0 0.0
    %966 = vmatprep.subr.mxu0 0.0
    %967 = vmatpush1.xpose.msra.mxu0 0.0
    %968 = vmatprep.subr.mxu0 0.0
    %969 = vmatpush1.xpose.msra.mxu0 0.0
    %970 = vmatprep.subr.mxu0 0.0
    %971 = vmatpush1.xpose.msra.mxu0 0.0
    %972 = vmatprep.subr.mxu0 0.0
    %973 = vmatpush1.xpose.msra.mxu0 0.0
    %974 = vmatprep.subr.mxu0 0.0
    %975 = vmatpush1.xpose.msra.mxu0 0.0
    %976 = vmatprep.subr.mxu0 0.0
    %977 = vmatpush1.xpose.msra.mxu0 0.0
    %978 = vmatprep.subr.mxu0 0.0
    %979 = vmatpush1.xpose.msra.mxu0 0.0
    %980 = vmatprep.subr.mxu0 0.0
    %981 = vmatpush1.xpose.msra.mxu0 %v949
    %982 = vmatprep.subr.mxu0 0.0
    %983 = vmatpush1.xpose.msra.mxu0 %v948
    %984 = vmatprep.subr.mxu0 0.0
    %985 = vmatpush2.xpose.msra.mxu0 0.0
    %986 = vmatprep.subr.mxu0 0.0
    %987 = vmatpush2.xpose.msra.mxu0 0.0
    %988 = vmatprep.subr.mxu0 0.0
    %989 = vmatpush2.xpose.msra.mxu0 0.0
    %990 = vmatprep.subr.mxu0 0.0
    %991 = vmatpush2.xpose.msra.mxu0 0.0
    %992 = vmatprep.subr.mxu0 0.0
    %993 = vmatpush2.xpose.msra.mxu0 0.0
    %994 = vmatprep.subr.mxu0 0.0
    %995 = vmatpush2.xpose.msra.mxu0 0.0
    %996 = vmatprep.subr.mxu0 0.0
    %997 = vmatpush2.xpose.msra.mxu0 0.0
    %998 = vmatprep.subr.mxu0 0.0
    %999 = vmatpush2.xpose.msra.mxu0 0.0
    %1000 = vmatprep.subr.mxu0 0.0
    %1001 = vmatpush2.xpose.msra.mxu0 0.0
    %1002 = vmatprep.subr.mxu0 0.0
    %1003 = vmatpush2.xpose.msra.mxu0 0.0
    %1004 = vmatprep.subr.mxu0 0.0
    %1005 = vmatpush2.xpose.msra.mxu0 0.0
    %1006 = vmatprep.subr.mxu0 0.0
    %1007 = vmatpush2.xpose.msra.mxu0 0.0
    %1008 = vmatprep.subr.mxu0 0.0
    %1009 = vmatpush2.xpose.msra.mxu0 0.0
    %1010 = vmatprep.subr.mxu0 0.0
    %1011 = vmatpush2.xpose.msra.mxu0 0.0
    %1012 = vmatprep.subr.mxu0 0.0
    %1013 = vmatpush2.xpose.msra.mxu0 0.0
    %1014 = vmatprep.subr.mxu0 0.0
    %1015 = vmatpush2.xpose.msra.mxu0 0.0
    %1016 = vmatprep.mubr.f32.mxu0 0.0
    %1017 = vmatmul.mubr.f32.gmra.mxu0 %v950
    %v1018 = vpop.f32.mrf.mxu0
    %v1019 = vadd.f32 0.0, %v1018
    %v1020 = vpop.f32.mrf.mxu0
    %1021 = vdwg.mxu0
    %s1022 = scalar_lea.vmem [#allocation7], 96
    %v1023 = vld [vmem:[%s1022] sm:$0xff]
    %v1024 = vld [vmem:[%s1022 + $0x8] sm:$0xff]
    %v1025 = vrot.slane %v572, 6
    %1027 = vmatprep.subr.mxu0 0.0
    %1028 = vmatpush1.xpose.msra.mxu0 0.0
    %1029 = vmatprep.subr.mxu0 0.0
    %1030 = vmatpush1.xpose.msra.mxu0 0.0
    %1031 = vmatprep.subr.mxu0 0.0
    %1032 = vmatpush1.xpose.msra.mxu0 0.0
    %1033 = vmatprep.subr.mxu0 0.0
    %1034 = vmatpush1.xpose.msra.mxu0 0.0
    %1035 = vmatprep.subr.mxu0 0.0
    %1036 = vmatpush1.xpose.msra.mxu0 0.0
    %1037 = vmatprep.subr.mxu0 0.0
    %1038 = vmatpush1.xpose.msra.mxu0 0.0
    %1039 = vmatprep.subr.mxu0 0.0
    %1040 = vmatpush1.xpose.msra.mxu0 0.0
    %1041 = vmatprep.subr.mxu0 0.0
    %1042 = vmatpush1.xpose.msra.mxu0 0.0
    %1043 = vmatprep.subr.mxu0 0.0
    %1044 = vmatpush1.xpose.msra.mxu0 0.0
    %1045 = vmatprep.subr.mxu0 0.0
    %1046 = vmatpush1.xpose.msra.mxu0 0.0
    %1047 = vmatprep.subr.mxu0 0.0
    %1048 = vmatpush1.xpose.msra.mxu0 0.0
    %1049 = vmatprep.subr.mxu0 0.0
    %1050 = vmatpush1.xpose.msra.mxu0 0.0
    %1051 = vmatprep.subr.mxu0 0.0
    %1052 = vmatpush1.xpose.msra.mxu0 0.0
    %1053 = vmatprep.subr.mxu0 0.0
    %1054 = vmatpush1.xpose.msra.mxu0 0.0
    %1055 = vmatprep.subr.mxu0 0.0
    %1056 = vmatpush1.xpose.msra.mxu0 %v1024
    %1057 = vmatprep.subr.mxu0 0.0
    %1058 = vmatpush1.xpose.msra.mxu0 %v1023
    %1059 = vmatprep.subr.mxu0 0.0
    %1060 = vmatpush2.xpose.msra.mxu0 0.0
    %1061 = vmatprep.subr.mxu0 0.0
    %1062 = vmatpush2.xpose.msra.mxu0 0.0
    %1063 = vmatprep.subr.mxu0 0.0
    %1064 = vmatpush2.xpose.msra.mxu0 0.0
    %1065 = vmatprep.subr.mxu0 0.0
    %1066 = vmatpush2.xpose.msra.mxu0 0.0
    %1067 = vmatprep.subr.mxu0 0.0
    %1068 = vmatpush2.xpose.msra.mxu0 0.0
    %1069 = vmatprep.subr.mxu0 0.0
    %1070 = vmatpush2.xpose.msra.mxu0 0.0
    %1071 = vmatprep.subr.mxu0 0.0
    %1072 = vmatpush2.xpose.msra.mxu0 0.0
    %1073 = vmatprep.subr.mxu0 0.0
    %1074 = vmatpush2.xpose.msra.mxu0 0.0
    %1075 = vmatprep.subr.mxu0 0.0
    %1076 = vmatpush2.xpose.msra.mxu0 0.0
    %1077 = vmatprep.subr.mxu0 0.0
    %1078 = vmatpush2.xpose.msra.mxu0 0.0
    %1079 = vmatprep.subr.mxu0 0.0
    %1080 = vmatpush2.xpose.msra.mxu0 0.0
    %1081 = vmatprep.subr.mxu0 0.0
    %1082 = vmatpush2.xpose.msra.mxu0 0.0
    %1083 = vmatprep.subr.mxu0 0.0
    %1084 = vmatpush2.xpose.msra.mxu0 0.0
    %1085 = vmatprep.subr.mxu0 0.0
    %1086 = vmatpush2.xpose.msra.mxu0 0.0
    %1087 = vmatprep.subr.mxu0 0.0
    %1088 = vmatpush2.xpose.msra.mxu0 0.0
    %1089 = vmatprep.subr.mxu0 0.0
    %1090 = vmatpush2.xpose.msra.mxu0 0.0
    %1091 = vmatprep.mubr.f32.mxu0 0.0
    %1092 = vmatmul.mubr.f32.gmra.mxu0 %v1025
    %v1093 = vpop.f32.mrf.mxu0
    %v1094 = vadd.f32 0.0, %v1093
    %v1095 = vpop.f32.mrf.mxu0
    %1096 = vdwg.mxu0
    %s1097 = scalar_lea.vmem [#allocation7], 112
    %v1098 = vld [vmem:[%s1097] sm:$0xff]
    %v1099 = vld [vmem:[%s1097 + $0x8] sm:$0xff]
    %v1100 = vrot.slane %v572, 7
    %1102 = vmatprep.subr.mxu0 0.0
    %1103 = vmatpush1.xpose.msra.mxu0 0.0
    %1104 = vmatprep.subr.mxu0 0.0
    %1105 = vmatpush1.xpose.msra.mxu0 0.0
    %1106 = vmatprep.subr.mxu0 0.0
    %1107 = vmatpush1.xpose.msra.mxu0 0.0
    %1108 = vmatprep.subr.mxu0 0.0
    %1109 = vmatpush1.xpose.msra.mxu0 0.0
    %1110 = vmatprep.subr.mxu0 0.0
    %1111 = vmatpush1.xpose.msra.mxu0 0.0
    %1112 = vmatprep.subr.mxu0 0.0
    %1113 = vmatpush1.xpose.msra.mxu0 0.0
    %1114 = vmatprep.subr.mxu0 0.0
    %1115 = vmatpush1.xpose.msra.mxu0 0.0
    %1116 = vmatprep.subr.mxu0 0.0
    %1117 = vmatpush1.xpose.msra.mxu0 0.0
    %1118 = vmatprep.subr.mxu0 0.0
    %1119 = vmatpush1.xpose.msra.mxu0 0.0
    %1120 = vmatprep.subr.mxu0 0.0
    %1121 = vmatpush1.xpose.msra.mxu0 0.0
    %1122 = vmatprep.subr.mxu0 0.0
    %1123 = vmatpush1.xpose.msra.mxu0 0.0
    %1124 = vmatprep.subr.mxu0 0.0
    %1125 = vmatpush1.xpose.msra.mxu0 0.0
    %1126 = vmatprep.subr.mxu0 0.0
    %1127 = vmatpush1.xpose.msra.mxu0 0.0
    %1128 = vmatprep.subr.mxu0 0.0
    %1129 = vmatpush1.xpose.msra.mxu0 0.0
    %1130 = vmatprep.subr.mxu0 0.0
    %1131 = vmatpush1.xpose.msra.mxu0 %v1099
    %1132 = vmatprep.subr.mxu0 0.0
    %1133 = vmatpush1.xpose.msra.mxu0 %v1098
    %1134 = vmatprep.subr.mxu0 0.0
    %1135 = vmatpush2.xpose.msra.mxu0 0.0
    %1136 = vmatprep.subr.mxu0 0.0
    %1137 = vmatpush2.xpose.msra.mxu0 0.0
    %1138 = vmatprep.subr.mxu0 0.0
    %1139 = vmatpush2.xpose.msra.mxu0 0.0
    %1140 = vmatprep.subr.mxu0 0.0
    %1141 = vmatpush2.xpose.msra.mxu0 0.0
    %1142 = vmatprep.subr.mxu0 0.0
    %1143 = vmatpush2.xpose.msra.mxu0 0.0
    %1144 = vmatprep.subr.mxu0 0.0
    %1145 = vmatpush2.xpose.msra.mxu0 0.0
    %1146 = vmatprep.subr.mxu0 0.0
    %1147 = vmatpush2.xpose.msra.mxu0 0.0
    %1148 = vmatprep.subr.mxu0 0.0
    %1149 = vmatpush2.xpose.msra.mxu0 0.0
    %1150 = vmatprep.subr.mxu0 0.0
    %1151 = vmatpush2.xpose.msra.mxu0 0.0
    %1152 = vmatprep.subr.mxu0 0.0
    %1153 = vmatpush2.xpose.msra.mxu0 0.0
    %1154 = vmatprep.subr.mxu0 0.0
    %1155 = vmatpush2.xpose.msra.mxu0 0.0
    %1156 = vmatprep.subr.mxu0 0.0
    %1157 = vmatpush2.xpose.msra.mxu0 0.0
    %1158 = vmatprep.subr.mxu0 0.0
    %1159 = vmatpush2.xpose.msra.mxu0 0.0
    %1160 = vmatprep.subr.mxu0 0.0
    %1161 = vmatpush2.xpose.msra.mxu0 0.0
    %1162 = vmatprep.subr.mxu0 0.0
    %1163 = vmatpush2.xpose.msra.mxu0 0.0
    %1164 = vmatprep.subr.mxu0 0.0
    %1165 = vmatpush2.xpose.msra.mxu0 0.0
    %1166 = vmatprep.mubr.f32.mxu0 0.0
    %1167 = vmatmul.mubr.f32.gmra.mxu0 %v1100
    %v1168 = vpop.f32.mrf.mxu0
    %v1169 = vadd.f32 0.0, %v1168
    %v1170 = vpop.f32.mrf.mxu0
    %1171 = vdwg.mxu0
    %v1173 = vrot.slane %v719, 7
    %v1176 = vrot.slane %v794, 6
    %v1179 = vrot.slane %v869, 5
    %v1182 = vrot.slane %v944, 4
    %v1185 = vrot.slane %v1019, 3
    %v1188 = vrot.slane %v1094, 2
    %v1191 = vrot.slane %v1169, 1
    %vm1193 = vcmask 1040384
    %v1194 = vsel %vm1193, %v643, %v1173
    %vm1195 = vcmask 1041408
    %v1196 = vsel %vm1195, %v1194, %v1176
    %vm1197 = vcmask 1042432
    %v1198 = vsel %vm1197, %v1196, %v1179
    %vm1199 = vcmask 1043456
    %v1200 = vsel %vm1199, %v1198, %v1182
    %vm1201 = vcmask 1044480
    %v1202 = vsel %vm1201, %v1200, %v1185
    %vm1203 = vcmask 1045504
    %v1204 = vsel %vm1203, %v1202, %v1188
    %vm1205 = vcmask 1046528
    %v1206 = vsel %vm1205, %v1204, %v1191
    %1208 = vset.pattern.permute.xlu0 9
    %1209 = vperm.xlu0 %1208, %v73
    %v1210 = vpop.permute.xlu0 %1209
    %1212 = vrot.lane.b32.xlu0 %v73, 127
    %v1213 = vpop.permute.xlu0 %1212
    %vm1214 = vcmask 64512
    %v1215 = vsel %vm1214, %v1213, 0
    %1217 = vmatprep.subr.mxu0 0.0
    %1218 = vmatpush1.msra.mxu0 0.0
    %1219 = vmatprep.subr.mxu0 0.0
    %1220 = vmatpush1.msra.mxu0 0.0
    %1221 = vmatprep.subr.mxu0 0.0
    %1222 = vmatpush1.msra.mxu0 0.0
    %1223 = vmatprep.subr.mxu0 0.0
    %1224 = vmatpush1.msra.mxu0 0.0
    %1225 = vmatprep.subr.mxu0 0.0
    %1226 = vmatpush1.msra.mxu0 0.0
    %1227 = vmatprep.subr.mxu0 0.0
    %1228 = vmatpush1.msra.mxu0 0.0
    %1229 = vmatprep.subr.mxu0 0.0
    %1230 = vmatpush1.msra.mxu0 0.0
    %1231 = vmatprep.subr.mxu0 0.0
    %1232 = vmatpush1.msra.mxu0 0.0
    %1233 = vmatprep.subr.mxu0 0.0
    %1234 = vmatpush1.msra.mxu0 0.0
    %1235 = vmatprep.subr.mxu0 0.0
    %1236 = vmatpush1.msra.mxu0 0.0
    %1237 = vmatprep.subr.mxu0 0.0
    %1238 = vmatpush1.msra.mxu0 0.0
    %1239 = vmatprep.subr.mxu0 0.0
    %1240 = vmatpush1.msra.mxu0 0.0
    %1241 = vmatprep.subr.mxu0 0.0
    %1242 = vmatpush1.msra.mxu0 0.0
    %1243 = vmatprep.subr.mxu0 0.0
    %1244 = vmatpush1.msra.mxu0 0.0
    %1245 = vmatprep.subr.mxu0 0.0
    %1246 = vmatpush1.msra.mxu0 0.0
    %1247 = vmatprep.subr.mxu0 0.0
    %1248 = vmatpush1.msra.mxu0 %v1206
    %1249 = vmatprep.subr.mxu0 0.0
    %1250 = vmatpush2.msra.mxu0 0.0
    %1251 = vmatprep.subr.mxu0 0.0
    %1252 = vmatpush2.msra.mxu0 0.0
    %1253 = vmatprep.subr.mxu0 0.0
    %1254 = vmatpush2.msra.mxu0 0.0
    %1255 = vmatprep.subr.mxu0 0.0
    %1256 = vmatpush2.msra.mxu0 0.0
    %1257 = vmatprep.subr.mxu0 0.0
    %1258 = vmatpush2.msra.mxu0 0.0
    %1259 = vmatprep.subr.mxu0 0.0
    %1260 = vmatpush2.msra.mxu0 0.0
    %1261 = vmatprep.subr.mxu0 0.0
    %1262 = vmatpush2.msra.mxu0 0.0
    %1263 = vmatprep.subr.mxu0 0.0
    %1264 = vmatpush2.msra.mxu0 0.0
    %1265 = vmatprep.subr.mxu0 0.0
    %1266 = vmatpush2.msra.mxu0 0.0
    %1267 = vmatprep.subr.mxu0 0.0
    %1268 = vmatpush2.msra.mxu0 0.0
    %1269 = vmatprep.subr.mxu0 0.0
    %1270 = vmatpush2.msra.mxu0 0.0
    %1271 = vmatprep.subr.mxu0 0.0
    %1272 = vmatpush2.msra.mxu0 0.0
    %1273 = vmatprep.subr.mxu0 0.0
    %1274 = vmatpush2.msra.mxu0 0.0
    %1275 = vmatprep.subr.mxu0 0.0
    %1276 = vmatpush2.msra.mxu0 0.0
    %1277 = vmatprep.subr.mxu0 0.0
    %1278 = vmatpush2.msra.mxu0 0.0
    %1279 = vmatprep.subr.mxu0 0.0
    %1280 = vmatpush2.msra.mxu0 0.0
    %1281 = vmatprep.mubr.f32.mxu0 0.0
    %1282 = vmatmul.mubr.f32.gmra.mxu0 %v1215
    %v1283 = vpop.f32.mrf.mxu0
    %v1284 = vadd.f32 %v1210, %v1283
    %v1285 = vpop.f32.mrf.mxu0
    %1286 = vdwg.mxu0
    %vm1287 = vcmp.gt.f32.partialorder %v1284, 0.0
    %v1288 = vmin.f32 %v1284, 0.0
    %v1289 = vmul.f32 %v1288, 1.442695
    %v1290 = vpow.pop %v1289
    %v1291 = vsub.f32 %v1290, 1.0
    %v1292 = vsel %vm1287, %v1284, %v1291
    %v1293 = vld [vmem:[%s3] sm:$0xf]
    %vm1294 = vcmask 130048
    %v1296 = vsel %vm1294, %v1292, 0
    %v1299 = vsel %vm1294, %v1293, 0
    %1301 = vmatprep.subr.mxu0 0.0
    %1302 = vmatpush1.xpose.msra.mxu0 0.0
    %1303 = vmatprep.subr.mxu0 0.0
    %1304 = vmatpush1.xpose.msra.mxu0 0.0
    %1305 = vmatprep.subr.mxu0 0.0
    %1306 = vmatpush1.xpose.msra.mxu0 0.0
    %1307 = vmatprep.subr.mxu0 0.0
    %1308 = vmatpush1.xpose.msra.mxu0 0.0
    %1309 = vmatprep.subr.mxu0 0.0
    %1310 = vmatpush1.xpose.msra.mxu0 0.0
    %1311 = vmatprep.subr.mxu0 0.0
    %1312 = vmatpush1.xpose.msra.mxu0 0.0
    %1313 = vmatprep.subr.mxu0 0.0
    %1314 = vmatpush1.xpose.msra.mxu0 0.0
    %1315 = vmatprep.subr.mxu0 0.0
    %1316 = vmatpush1.xpose.msra.mxu0 0.0
    %1317 = vmatprep.subr.mxu0 0.0
    %1318 = vmatpush1.xpose.msra.mxu0 0.0
    %1319 = vmatprep.subr.mxu0 0.0
    %1320 = vmatpush1.xpose.msra.mxu0 0.0
    %1321 = vmatprep.subr.mxu0 0.0
    %1322 = vmatpush1.xpose.msra.mxu0 0.0
    %1323 = vmatprep.subr.mxu0 0.0
    %1324 = vmatpush1.xpose.msra.mxu0 0.0
    %1325 = vmatprep.subr.mxu0 0.0
    %1326 = vmatpush1.xpose.msra.mxu0 0.0
    %1327 = vmatprep.subr.mxu0 0.0
    %1328 = vmatpush1.xpose.msra.mxu0 0.0
    %1329 = vmatprep.subr.mxu0 0.0
    %1330 = vmatpush1.xpose.msra.mxu0 0.0
    %1331 = vmatprep.subr.mxu0 0.0
    %1332 = vmatpush1.xpose.msra.mxu0 %v1299
    %1333 = vmatprep.subr.mxu0 0.0
    %1334 = vmatpush2.xpose.msra.mxu0 0.0
    %1335 = vmatprep.subr.mxu0 0.0
    %1336 = vmatpush2.xpose.msra.mxu0 0.0
    %1337 = vmatprep.subr.mxu0 0.0
    %1338 = vmatpush2.xpose.msra.mxu0 0.0
    %1339 = vmatprep.subr.mxu0 0.0
    %1340 = vmatpush2.xpose.msra.mxu0 0.0
    %1341 = vmatprep.subr.mxu0 0.0
    %1342 = vmatpush2.xpose.msra.mxu0 0.0
    %1343 = vmatprep.subr.mxu0 0.0
    %1344 = vmatpush2.xpose.msra.mxu0 0.0
    %1345 = vmatprep.subr.mxu0 0.0
    %1346 = vmatpush2.xpose.msra.mxu0 0.0
    %1347 = vmatprep.subr.mxu0 0.0
    %1348 = vmatpush2.xpose.msra.mxu0 0.0
    %1349 = vmatprep.subr.mxu0 0.0
    %1350 = vmatpush2.xpose.msra.mxu0 0.0
    %1351 = vmatprep.subr.mxu0 0.0
    %1352 = vmatpush2.xpose.msra.mxu0 0.0
    %1353 = vmatprep.subr.mxu0 0.0
    %1354 = vmatpush2.xpose.msra.mxu0 0.0
    %1355 = vmatprep.subr.mxu0 0.0
    %1356 = vmatpush2.xpose.msra.mxu0 0.0
    %1357 = vmatprep.subr.mxu0 0.0
    %1358 = vmatpush2.xpose.msra.mxu0 0.0
    %1359 = vmatprep.subr.mxu0 0.0
    %1360 = vmatpush2.xpose.msra.mxu0 0.0
    %1361 = vmatprep.subr.mxu0 0.0
    %1362 = vmatpush2.xpose.msra.mxu0 0.0
    %1363 = vmatprep.subr.mxu0 0.0
    %1364 = vmatpush2.xpose.msra.mxu0 0.0
    %1365 = vmatprep.mubr.f32.mxu0 0.0
    %1366 = vmatmul.mubr.f32.gmra.mxu0 %v1296
    %v1367 = vpop.f32.mrf.mxu0
    %v1368 = vadd.f32 0.0, %v1367
    %v1369 = vpop.f32.mrf.mxu0
    %1370 = vdwg.mxu0
    %1372 = vrot.lane.b32.xlu0 %v1368, 10
    %v1373 = vpop.permute.xlu0 %1372
    %v1375 = vadd.f32 %v74, %v1373
    %v1376 = vrot.slane %v1292, 1
    %1377 = vrot.lane.b32.xlu0 %v1293, 112
    %v1378 = vpop.permute.xlu0 %1377
    %v1379 = vsel %vm1294, %v1376, 0
    %v1381 = vsel %vm1294, %v1378, 0
    %1383 = vmatprep.subr.mxu0 0.0
    %1384 = vmatpush1.xpose.msra.mxu0 0.0
    %1385 = vmatprep.subr.mxu0 0.0
    %1386 = vmatpush1.xpose.msra.mxu0 0.0
    %1387 = vmatprep.subr.mxu0 0.0
    %1388 = vmatpush1.xpose.msra.mxu0 0.0
    %1389 = vmatprep.subr.mxu0 0.0
    %1390 = vmatpush1.xpose.msra.mxu0 0.0
    %1391 = vmatprep.subr.mxu0 0.0
    %1392 = vmatpush1.xpose.msra.mxu0 0.0
    %1393 = vmatprep.subr.mxu0 0.0
    %1394 = vmatpush1.xpose.msra.mxu0 0.0
    %1395 = vmatprep.subr.mxu0 0.0
    %1396 = vmatpush1.xpose.msra.mxu0 0.0
    %1397 = vmatprep.subr.mxu0 0.0
    %1398 = vmatpush1.xpose.msra.mxu0 0.0
    %1399 = vmatprep.subr.mxu0 0.0
    %1400 = vmatpush1.xpose.msra.mxu0 0.0
    %1401 = vmatprep.subr.mxu0 0.0
    %1402 = vmatpush1.xpose.msra.mxu0 0.0
    %1403 = vmatprep.subr.mxu0 0.0
    %1404 = vmatpush1.xpose.msra.mxu0 0.0
    %1405 = vmatprep.subr.mxu0 0.0
    %1406 = vmatpush1.xpose.msra.mxu0 0.0
    %1407 = vmatprep.subr.mxu0 0.0
    %1408 = vmatpush1.xpose.msra.mxu0 0.0
    %1409 = vmatprep.subr.mxu0 0.0
    %1410 = vmatpush1.xpose.msra.mxu0 0.0
    %1411 = vmatprep.subr.mxu0 0.0
    %1412 = vmatpush1.xpose.msra.mxu0 0.0
    %1413 = vmatprep.subr.mxu0 0.0
    %1414 = vmatpush1.xpose.msra.mxu0 %v1381
    %1415 = vmatprep.subr.mxu0 0.0
    %1416 = vmatpush2.xpose.msra.mxu0 0.0
    %1417 = vmatprep.subr.mxu0 0.0
    %1418 = vmatpush2.xpose.msra.mxu0 0.0
    %1419 = vmatprep.subr.mxu0 0.0
    %1420 = vmatpush2.xpose.msra.mxu0 0.0
    %1421 = vmatprep.subr.mxu0 0.0
    %1422 = vmatpush2.xpose.msra.mxu0 0.0
    %1423 = vmatprep.subr.mxu0 0.0
    %1424 = vmatpush2.xpose.msra.mxu0 0.0
    %1425 = vmatprep.subr.mxu0 0.0
    %1426 = vmatpush2.xpose.msra.mxu0 0.0
    %1427 = vmatprep.subr.mxu0 0.0
    %1428 = vmatpush2.xpose.msra.mxu0 0.0
    %1429 = vmatprep.subr.mxu0 0.0
    %1430 = vmatpush2.xpose.msra.mxu0 0.0
    %1431 = vmatprep.subr.mxu0 0.0
    %1432 = vmatpush2.xpose.msra.mxu0 0.0
    %1433 = vmatprep.subr.mxu0 0.0
    %1434 = vmatpush2.xpose.msra.mxu0 0.0
    %1435 = vmatprep.subr.mxu0 0.0
    %1436 = vmatpush2.xpose.msra.mxu0 0.0
    %1437 = vmatprep.subr.mxu0 0.0
    %1438 = vmatpush2.xpose.msra.mxu0 0.0
    %1439 = vmatprep.subr.mxu0 0.0
    %1440 = vmatpush2.xpose.msra.mxu0 0.0
    %1441 = vmatprep.subr.mxu0 0.0
    %1442 = vmatpush2.xpose.msra.mxu0 0.0
    %1443 = vmatprep.subr.mxu0 0.0
    %1444 = vmatpush2.xpose.msra.mxu0 0.0
    %1445 = vmatprep.subr.mxu0 0.0
    %1446 = vmatpush2.xpose.msra.mxu0 0.0
    %1447 = vmatprep.mubr.f32.mxu0 0.0
    %1448 = vmatmul.mubr.f32.gmra.mxu0 %v1379
    %v1449 = vpop.f32.mrf.mxu0
    %v1450 = vadd.f32 0.0, %v1449
    %v1451 = vpop.f32.mrf.mxu0
    %1452 = vdwg.mxu0
    %1454 = vrot.lane.b32.xlu0 %v1450, 10
    %v1455 = vpop.permute.xlu0 %1454
    %v1457 = vadd.f32 %v1375, %v1455
    %v1458 = vrot.slane %v1292, 2
    %1459 = vrot.lane.b32.xlu0 %v1293, 96
    %v1460 = vpop.permute.xlu0 %1459
    %v1461 = vsel %vm1294, %v1458, 0
    %v1463 = vsel %vm1294, %v1460, 0
    %1465 = vmatprep.subr.mxu0 0.0
    %1466 = vmatpush1.xpose.msra.mxu0 0.0
    %1467 = vmatprep.subr.mxu0 0.0
    %1468 = vmatpush1.xpose.msra.mxu0 0.0
    %1469 = vmatprep.subr.mxu0 0.0
    %1470 = vmatpush1.xpose.msra.mxu0 0.0
    %1471 = vmatprep.subr.mxu0 0.0
    %1472 = vmatpush1.xpose.msra.mxu0 0.0
    %1473 = vmatprep.subr.mxu0 0.0
    %1474 = vmatpush1.xpose.msra.mxu0 0.0
    %1475 = vmatprep.subr.mxu0 0.0
    %1476 = vmatpush1.xpose.msra.mxu0 0.0
    %1477 = vmatprep.subr.mxu0 0.0
    %1478 = vmatpush1.xpose.msra.mxu0 0.0
    %1479 = vmatprep.subr.mxu0 0.0
    %1480 = vmatpush1.xpose.msra.mxu0 0.0
    %1481 = vmatprep.subr.mxu0 0.0
    %1482 = vmatpush1.xpose.msra.mxu0 0.0
    %1483 = vmatprep.subr.mxu0 0.0
    %1484 = vmatpush1.xpose.msra.mxu0 0.0
    %1485 = vmatprep.subr.mxu0 0.0
    %1486 = vmatpush1.xpose.msra.mxu0 0.0
    %1487 = vmatprep.subr.mxu0 0.0
    %1488 = vmatpush1.xpose.msra.mxu0 0.0
    %1489 = vmatprep.subr.mxu0 0.0
    %1490 = vmatpush1.xpose.msra.mxu0 0.0
    %1491 = vmatprep.subr.mxu0 0.0
    %1492 = vmatpush1.xpose.msra.mxu0 0.0
    %1493 = vmatprep.subr.mxu0 0.0
    %1494 = vmatpush1.xpose.msra.mxu0 0.0
    %1495 = vmatprep.subr.mxu0 0.0
    %1496 = vmatpush1.xpose.msra.mxu0 %v1463
    %1497 = vmatprep.subr.mxu0 0.0
    %1498 = vmatpush2.xpose.msra.mxu0 0.0
    %1499 = vmatprep.subr.mxu0 0.0
    %1500 = vmatpush2.xpose.msra.mxu0 0.0
    %1501 = vmatprep.subr.mxu0 0.0
    %1502 = vmatpush2.xpose.msra.mxu0 0.0
    %1503 = vmatprep.subr.mxu0 0.0
    %1504 = vmatpush2.xpose.msra.mxu0 0.0
    %1505 = vmatprep.subr.mxu0 0.0
    %1506 = vmatpush2.xpose.msra.mxu0 0.0
    %1507 = vmatprep.subr.mxu0 0.0
    %1508 = vmatpush2.xpose.msra.mxu0 0.0
    %1509 = vmatprep.subr.mxu0 0.0
    %1510 = vmatpush2.xpose.msra.mxu0 0.0
    %1511 = vmatprep.subr.mxu0 0.0
    %1512 = vmatpush2.xpose.msra.mxu0 0.0
    %1513 = vmatprep.subr.mxu0 0.0
    %1514 = vmatpush2.xpose.msra.mxu0 0.0
    %1515 = vmatprep.subr.mxu0 0.0
    %1516 = vmatpush2.xpose.msra.mxu0 0.0
    %1517 = vmatprep.subr.mxu0 0.0
    %1518 = vmatpush2.xpose.msra.mxu0 0.0
    %1519 = vmatprep.subr.mxu0 0.0
    %1520 = vmatpush2.xpose.msra.mxu0 0.0
    %1521 = vmatprep.subr.mxu0 0.0
    %1522 = vmatpush2.xpose.msra.mxu0 0.0
    %1523 = vmatprep.subr.mxu0 0.0
    %1524 = vmatpush2.xpose.msra.mxu0 0.0
    %1525 = vmatprep.subr.mxu0 0.0
    %1526 = vmatpush2.xpose.msra.mxu0 0.0
    %1527 = vmatprep.subr.mxu0 0.0
    %1528 = vmatpush2.xpose.msra.mxu0 0.0
    %1529 = vmatprep.mubr.f32.mxu0 0.0
    %1530 = vmatmul.mubr.f32.gmra.mxu0 %v1461
    %v1531 = vpop.f32.mrf.mxu0
    %v1532 = vadd.f32 0.0, %v1531
    %v1533 = vpop.f32.mrf.mxu0
    %1534 = vdwg.mxu0
    %1536 = vrot.lane.b32.xlu0 %v1532, 10
    %v1537 = vpop.permute.xlu0 %1536
    %v1539 = vadd.f32 %v1457, %v1537
    %v1540 = vrot.slane %v1292, 3
    %1541 = vrot.lane.b32.xlu0 %v1293, 80
    %v1542 = vpop.permute.xlu0 %1541
    %v1543 = vsel %vm1294, %v1540, 0
    %v1545 = vsel %vm1294, %v1542, 0
    %1547 = vmatprep.subr.mxu0 0.0
    %1548 = vmatpush1.xpose.msra.mxu0 0.0
    %1549 = vmatprep.subr.mxu0 0.0
    %1550 = vmatpush1.xpose.msra.mxu0 0.0
    %1551 = vmatprep.subr.mxu0 0.0
    %1552 = vmatpush1.xpose.msra.mxu0 0.0
    %1553 = vmatprep.subr.mxu0 0.0
    %1554 = vmatpush1.xpose.msra.mxu0 0.0
    %1555 = vmatprep.subr.mxu0 0.0
    %1556 = vmatpush1.xpose.msra.mxu0 0.0
    %1557 = vmatprep.subr.mxu0 0.0
    %1558 = vmatpush1.xpose.msra.mxu0 0.0
    %1559 = vmatprep.subr.mxu0 0.0
    %1560 = vmatpush1.xpose.msra.mxu0 0.0
    %1561 = vmatprep.subr.mxu0 0.0
    %1562 = vmatpush1.xpose.msra.mxu0 0.0
    %1563 = vmatprep.subr.mxu0 0.0
    %1564 = vmatpush1.xpose.msra.mxu0 0.0
    %1565 = vmatprep.subr.mxu0 0.0
    %1566 = vmatpush1.xpose.msra.mxu0 0.0
    %1567 = vmatprep.subr.mxu0 0.0
    %1568 = vmatpush1.xpose.msra.mxu0 0.0
    %1569 = vmatprep.subr.mxu0 0.0
    %1570 = vmatpush1.xpose.msra.mxu0 0.0
    %1571 = vmatprep.subr.mxu0 0.0
    %1572 = vmatpush1.xpose.msra.mxu0 0.0
    %1573 = vmatprep.subr.mxu0 0.0
    %1574 = vmatpush1.xpose.msra.mxu0 0.0
    %1575 = vmatprep.subr.mxu0 0.0
    %1576 = vmatpush1.xpose.msra.mxu0 0.0
    %1577 = vmatprep.subr.mxu0 0.0
    %1578 = vmatpush1.xpose.msra.mxu0 %v1545
    %1579 = vmatprep.subr.mxu0 0.0
    %1580 = vmatpush2.xpose.msra.mxu0 0.0
    %1581 = vmatprep.subr.mxu0 0.0
    %1582 = vmatpush2.xpose.msra.mxu0 0.0
    %1583 = vmatprep.subr.mxu0 0.0
    %1584 = vmatpush2.xpose.msra.mxu0 0.0
    %1585 = vmatprep.subr.mxu0 0.0
    %1586 = vmatpush2.xpose.msra.mxu0 0.0
    %1587 = vmatprep.subr.mxu0 0.0
    %1588 = vmatpush2.xpose.msra.mxu0 0.0
    %1589 = vmatprep.subr.mxu0 0.0
    %1590 = vmatpush2.xpose.msra.mxu0 0.0
    %1591 = vmatprep.subr.mxu0 0.0
    %1592 = vmatpush2.xpose.msra.mxu0 0.0
    %1593 = vmatprep.subr.mxu0 0.0
    %1594 = vmatpush2.xpose.msra.mxu0 0.0
    %1595 = vmatprep.subr.mxu0 0.0
    %1596 = vmatpush2.xpose.msra.mxu0 0.0
    %1597 = vmatprep.subr.mxu0 0.0
    %1598 = vmatpush2.xpose.msra.mxu0 0.0
    %1599 = vmatprep.subr.mxu0 0.0
    %1600 = vmatpush2.xpose.msra.mxu0 0.0
    %1601 = vmatprep.subr.mxu0 0.0
    %1602 = vmatpush2.xpose.msra.mxu0 0.0
    %1603 = vmatprep.subr.mxu0 0.0
    %1604 = vmatpush2.xpose.msra.mxu0 0.0
    %1605 = vmatprep.subr.mxu0 0.0
    %1606 = vmatpush2.xpose.msra.mxu0 0.0
    %1607 = vmatprep.subr.mxu0 0.0
    %1608 = vmatpush2.xpose.msra.mxu0 0.0
    %1609 = vmatprep.subr.mxu0 0.0
    %1610 = vmatpush2.xpose.msra.mxu0 0.0
    %1611 = vmatprep.mubr.f32.mxu0 0.0
    %1612 = vmatmul.mubr.f32.gmra.mxu0 %v1543
    %v1613 = vpop.f32.mrf.mxu0
    %v1614 = vadd.f32 0.0, %v1613
    %v1615 = vpop.f32.mrf.mxu0
    %1616 = vdwg.mxu0
    %1618 = vrot.lane.b32.xlu0 %v1614, 10
    %v1619 = vpop.permute.xlu0 %1618
    %v1621 = vadd.f32 %v1539, %v1619
    %1622 = vmatprep.subr.mxu0 0.0
    %1623 = vmatpush1.xpose.msra.mxu0 0.0
    %1624 = vmatprep.subr.mxu0 0.0
    %1625 = vmatpush1.xpose.msra.mxu0 0.0
    %1626 = vmatprep.subr.mxu0 0.0
    %1627 = vmatpush1.xpose.msra.mxu0 0.0
    %1628 = vmatprep.subr.mxu0 0.0
    %1629 = vmatpush1.xpose.msra.mxu0 0.0
    %1630 = vmatprep.subr.mxu0 0.0
    %1631 = vmatpush1.xpose.msra.mxu0 0.0
    %1632 = vmatprep.subr.mxu0 0.0
    %1633 = vmatpush1.xpose.msra.mxu0 0.0
    %1634 = vmatprep.subr.mxu0 0.0
    %1635 = vmatpush1.xpose.msra.mxu0 0.0
    %1636 = vmatprep.subr.mxu0 0.0
    %1637 = vmatpush1.xpose.msra.mxu0 0.0
    %1638 = vmatprep.subr.mxu0 0.0
    %1639 = vmatpush1.xpose.msra.mxu0 0.0
    %1640 = vmatprep.subr.mxu0 0.0
    %1641 = vmatpush1.xpose.msra.mxu0 0.0
    %1642 = vmatprep.subr.mxu0 0.0
    %1643 = vmatpush1.xpose.msra.mxu0 0.0
    %1644 = vmatprep.subr.mxu0 0.0
    %1645 = vmatpush1.xpose.msra.mxu0 0.0
    %1646 = vmatprep.subr.mxu0 0.0
    %1647 = vmatpush1.xpose.msra.mxu0 0.0
    %1648 = vmatprep.subr.mxu0 0.0
    %1649 = vmatpush1.xpose.msra.mxu0 0.0
    %1650 = vmatprep.subr.mxu0 0.0
    %1651 = vmatpush1.xpose.msra.mxu0 %v575
    %1652 = vmatprep.subr.mxu0 0.0
    %1653 = vmatpush1.xpose.msra.mxu0 %v574
    %1654 = vmatprep.subr.mxu0 0.0
    %1655 = vmatpush2.xpose.msra.mxu0 0.0
    %1656 = vmatprep.subr.mxu0 0.0
    %1657 = vmatpush2.xpose.msra.mxu0 0.0
    %1658 = vmatprep.subr.mxu0 0.0
    %1659 = vmatpush2.xpose.msra.mxu0 0.0
    %1660 = vmatprep.subr.mxu0 0.0
    %1661 = vmatpush2.xpose.msra.mxu0 0.0
    %1662 = vmatprep.subr.mxu0 0.0
    %1663 = vmatpush2.xpose.msra.mxu0 0.0
    %1664 = vmatprep.subr.mxu0 0.0
    %1665 = vmatpush2.xpose.msra.mxu0 0.0
    %1666 = vmatprep.subr.mxu0 0.0
    %1667 = vmatpush2.xpose.msra.mxu0 0.0
    %1668 = vmatprep.subr.mxu0 0.0
    %1669 = vmatpush2.xpose.msra.mxu0 0.0
    %1670 = vmatprep.subr.mxu0 0.0
    %1671 = vmatpush2.xpose.msra.mxu0 0.0
    %1672 = vmatprep.subr.mxu0 0.0
    %1673 = vmatpush2.xpose.msra.mxu0 0.0
    %1674 = vmatprep.subr.mxu0 0.0
    %1675 = vmatpush2.xpose.msra.mxu0 0.0
    %1676 = vmatprep.subr.mxu0 0.0
    %1677 = vmatpush2.xpose.msra.mxu0 0.0
    %1678 = vmatprep.subr.mxu0 0.0
    %1679 = vmatpush2.xpose.msra.mxu0 0.0
    %1680 = vmatprep.subr.mxu0 0.0
    %1681 = vmatpush2.xpose.msra.mxu0 0.0
    %1682 = vmatprep.subr.mxu0 0.0
    %1683 = vmatpush2.xpose.msra.mxu0 0.0
    %1684 = vmatprep.subr.mxu0 0.0
    %1685 = vmatpush2.xpose.msra.mxu0 0.0
    %1686 = vmatprep.mubr.f32.mxu0 0.0
    %1687 = vmatmul.mubr.f32.gmra.mxu0 %v573
    %v1688 = vpop.f32.mrf.mxu0
    %v1689 = vadd.f32 0.0, %v1688
    %v1690 = vpop.f32.mrf.mxu0
    %1691 = vdwg.mxu0
    %v1693 = vrot.slane %v573, 1
    %1695 = vmatprep.subr.mxu0 0.0
    %1696 = vmatpush1.xpose.msra.mxu0 0.0
    %1697 = vmatprep.subr.mxu0 0.0
    %1698 = vmatpush1.xpose.msra.mxu0 0.0
    %1699 = vmatprep.subr.mxu0 0.0
    %1700 = vmatpush1.xpose.msra.mxu0 0.0
    %1701 = vmatprep.subr.mxu0 0.0
    %1702 = vmatpush1.xpose.msra.mxu0 0.0
    %1703 = vmatprep.subr.mxu0 0.0
    %1704 = vmatpush1.xpose.msra.mxu0 0.0
    %1705 = vmatprep.subr.mxu0 0.0
    %1706 = vmatpush1.xpose.msra.mxu0 0.0
    %1707 = vmatprep.subr.mxu0 0.0
    %1708 = vmatpush1.xpose.msra.mxu0 0.0
    %1709 = vmatprep.subr.mxu0 0.0
    %1710 = vmatpush1.xpose.msra.mxu0 0.0
    %1711 = vmatprep.subr.mxu0 0.0
    %1712 = vmatpush1.xpose.msra.mxu0 0.0
    %1713 = vmatprep.subr.mxu0 0.0
    %1714 = vmatpush1.xpose.msra.mxu0 0.0
    %1715 = vmatprep.subr.mxu0 0.0
    %1716 = vmatpush1.xpose.msra.mxu0 0.0
    %1717 = vmatprep.subr.mxu0 0.0
    %1718 = vmatpush1.xpose.msra.mxu0 0.0
    %1719 = vmatprep.subr.mxu0 0.0
    %1720 = vmatpush1.xpose.msra.mxu0 0.0
    %1721 = vmatprep.subr.mxu0 0.0
    %1722 = vmatpush1.xpose.msra.mxu0 0.0
    %1723 = vmatprep.subr.mxu0 0.0
    %1724 = vmatpush1.xpose.msra.mxu0 %v648
    %1725 = vmatprep.subr.mxu0 0.0
    %1726 = vmatpush1.xpose.msra.mxu0 %v647
    %1727 = vmatprep.subr.mxu0 0.0
    %1728 = vmatpush2.xpose.msra.mxu0 0.0
    %1729 = vmatprep.subr.mxu0 0.0
    %1730 = vmatpush2.xpose.msra.mxu0 0.0
    %1731 = vmatprep.subr.mxu0 0.0
    %1732 = vmatpush2.xpose.msra.mxu0 0.0
    %1733 = vmatprep.subr.mxu0 0.0
    %1734 = vmatpush2.xpose.msra.mxu0 0.0
    %1735 = vmatprep.subr.mxu0 0.0
    %1736 = vmatpush2.xpose.msra.mxu0 0.0
    %1737 = vmatprep.subr.mxu0 0.0
    %1738 = vmatpush2.xpose.msra.mxu0 0.0
    %1739 = vmatprep.subr.mxu0 0.0
    %1740 = vmatpush2.xpose.msra.mxu0 0.0
    %1741 = vmatprep.subr.mxu0 0.0
    %1742 = vmatpush2.xpose.msra.mxu0 0.0
    %1743 = vmatprep.subr.mxu0 0.0
    %1744 = vmatpush2.xpose.msra.mxu0 0.0
    %1745 = vmatprep.subr.mxu0 0.0
    %1746 = vmatpush2.xpose.msra.mxu0 0.0
    %1747 = vmatprep.subr.mxu0 0.0
    %1748 = vmatpush2.xpose.msra.mxu0 0.0
    %1749 = vmatprep.subr.mxu0 0.0
    %1750 = vmatpush2.xpose.msra.mxu0 0.0
    %1751 = vmatprep.subr.mxu0 0.0
    %1752 = vmatpush2.xpose.msra.mxu0 0.0
    %1753 = vmatprep.subr.mxu0 0.0
    %1754 = vmatpush2.xpose.msra.mxu0 0.0
    %1755 = vmatprep.subr.mxu0 0.0
    %1756 = vmatpush2.xpose.msra.mxu0 0.0
    %1757 = vmatprep.subr.mxu0 0.0
    %1758 = vmatpush2.xpose.msra.mxu0 0.0
    %1759 = vmatprep.mubr.f32.mxu0 0.0
    %1760 = vmatmul.mubr.f32.gmra.mxu0 %v1693
    %v1761 = vpop.f32.mrf.mxu0
    %v1762 = vadd.f32 0.0, %v1761
    %v1763 = vpop.f32.mrf.mxu0
    %1764 = vdwg.mxu0
    %v1765 = vrot.slane %v573, 2
    %1767 = vmatprep.subr.mxu0 0.0
    %1768 = vmatpush1.xpose.msra.mxu0 0.0
    %1769 = vmatprep.subr.mxu0 0.0
    %1770 = vmatpush1.xpose.msra.mxu0 0.0
    %1771 = vmatprep.subr.mxu0 0.0
    %1772 = vmatpush1.xpose.msra.mxu0 0.0
    %1773 = vmatprep.subr.mxu0 0.0
    %1774 = vmatpush1.xpose.msra.mxu0 0.0
    %1775 = vmatprep.subr.mxu0 0.0
    %1776 = vmatpush1.xpose.msra.mxu0 0.0
    %1777 = vmatprep.subr.mxu0 0.0
    %1778 = vmatpush1.xpose.msra.mxu0 0.0
    %1779 = vmatprep.subr.mxu0 0.0
    %1780 = vmatpush1.xpose.msra.mxu0 0.0
    %1781 = vmatprep.subr.mxu0 0.0
    %1782 = vmatpush1.xpose.msra.mxu0 0.0
    %1783 = vmatprep.subr.mxu0 0.0
    %1784 = vmatpush1.xpose.msra.mxu0 0.0
    %1785 = vmatprep.subr.mxu0 0.0
    %1786 = vmatpush1.xpose.msra.mxu0 0.0
    %1787 = vmatprep.subr.mxu0 0.0
    %1788 = vmatpush1.xpose.msra.mxu0 0.0
    %1789 = vmatprep.subr.mxu0 0.0
    %1790 = vmatpush1.xpose.msra.mxu0 0.0
    %1791 = vmatprep.subr.mxu0 0.0
    %1792 = vmatpush1.xpose.msra.mxu0 0.0
    %1793 = vmatprep.subr.mxu0 0.0
    %1794 = vmatpush1.xpose.msra.mxu0 0.0
    %1795 = vmatprep.subr.mxu0 0.0
    %1796 = vmatpush1.xpose.msra.mxu0 %v724
    %1797 = vmatprep.subr.mxu0 0.0
    %1798 = vmatpush1.xpose.msra.mxu0 %v723
    %1799 = vmatprep.subr.mxu0 0.0
    %1800 = vmatpush2.xpose.msra.mxu0 0.0
    %1801 = vmatprep.subr.mxu0 0.0
    %1802 = vmatpush2.xpose.msra.mxu0 0.0
    %1803 = vmatprep.subr.mxu0 0.0
    %1804 = vmatpush2.xpose.msra.mxu0 0.0
    %1805 = vmatprep.subr.mxu0 0.0
    %1806 = vmatpush2.xpose.msra.mxu0 0.0
    %1807 = vmatprep.subr.mxu0 0.0
    %1808 = vmatpush2.xpose.msra.mxu0 0.0
    %1809 = vmatprep.subr.mxu0 0.0
    %1810 = vmatpush2.xpose.msra.mxu0 0.0
    %1811 = vmatprep.subr.mxu0 0.0
    %1812 = vmatpush2.xpose.msra.mxu0 0.0
    %1813 = vmatprep.subr.mxu0 0.0
    %1814 = vmatpush2.xpose.msra.mxu0 0.0
    %1815 = vmatprep.subr.mxu0 0.0
    %1816 = vmatpush2.xpose.msra.mxu0 0.0
    %1817 = vmatprep.subr.mxu0 0.0
    %1818 = vmatpush2.xpose.msra.mxu0 0.0
    %1819 = vmatprep.subr.mxu0 0.0
    %1820 = vmatpush2.xpose.msra.mxu0 0.0
    %1821 = vmatprep.subr.mxu0 0.0
    %1822 = vmatpush2.xpose.msra.mxu0 0.0
    %1823 = vmatprep.subr.mxu0 0.0
    %1824 = vmatpush2.xpose.msra.mxu0 0.0
    %1825 = vmatprep.subr.mxu0 0.0
    %1826 = vmatpush2.xpose.msra.mxu0 0.0
    %1827 = vmatprep.subr.mxu0 0.0
    %1828 = vmatpush2.xpose.msra.mxu0 0.0
    %1829 = vmatprep.subr.mxu0 0.0
    %1830 = vmatpush2.xpose.msra.mxu0 0.0
    %1831 = vmatprep.mubr.f32.mxu0 0.0
    %1832 = vmatmul.mubr.f32.gmra.mxu0 %v1765
    %v1833 = vpop.f32.mrf.mxu0
    %v1834 = vadd.f32 0.0, %v1833
    %v1835 = vpop.f32.mrf.mxu0
    %1836 = vdwg.mxu0
    %v1837 = vrot.slane %v573, 3
    %1839 = vmatprep.subr.mxu0 0.0
    %1840 = vmatpush1.xpose.msra.mxu0 0.0
    %1841 = vmatprep.subr.mxu0 0.0
    %1842 = vmatpush1.xpose.msra.mxu0 0.0
    %1843 = vmatprep.subr.mxu0 0.0
    %1844 = vmatpush1.xpose.msra.mxu0 0.0
    %1845 = vmatprep.subr.mxu0 0.0
    %1846 = vmatpush1.xpose.msra.mxu0 0.0
    %1847 = vmatprep.subr.mxu0 0.0
    %1848 = vmatpush1.xpose.msra.mxu0 0.0
    %1849 = vmatprep.subr.mxu0 0.0
    %1850 = vmatpush1.xpose.msra.mxu0 0.0
    %1851 = vmatprep.subr.mxu0 0.0
    %1852 = vmatpush1.xpose.msra.mxu0 0.0
    %1853 = vmatprep.subr.mxu0 0.0
    %1854 = vmatpush1.xpose.msra.mxu0 0.0
    %1855 = vmatprep.subr.mxu0 0.0
    %1856 = vmatpush1.xpose.msra.mxu0 0.0
    %1857 = vmatprep.subr.mxu0 0.0
    %1858 = vmatpush1.xpose.msra.mxu0 0.0
    %1859 = vmatprep.subr.mxu0 0.0
    %1860 = vmatpush1.xpose.msra.mxu0 0.0
    %1861 = vmatprep.subr.mxu0 0.0
    %1862 = vmatpush1.xpose.msra.mxu0 0.0
    %1863 = vmatprep.subr.mxu0 0.0
    %1864 = vmatpush1.xpose.msra.mxu0 0.0
    %1865 = vmatprep.subr.mxu0 0.0
    %1866 = vmatpush1.xpose.msra.mxu0 0.0
    %1867 = vmatprep.subr.mxu0 0.0
    %1868 = vmatpush1.xpose.msra.mxu0 %v799
    %1869 = vmatprep.subr.mxu0 0.0
    %1870 = vmatpush1.xpose.msra.mxu0 %v798
    %1871 = vmatprep.subr.mxu0 0.0
    %1872 = vmatpush2.xpose.msra.mxu0 0.0
    %1873 = vmatprep.subr.mxu0 0.0
    %1874 = vmatpush2.xpose.msra.mxu0 0.0
    %1875 = vmatprep.subr.mxu0 0.0
    %1876 = vmatpush2.xpose.msra.mxu0 0.0
    %1877 = vmatprep.subr.mxu0 0.0
    %1878 = vmatpush2.xpose.msra.mxu0 0.0
    %1879 = vmatprep.subr.mxu0 0.0
    %1880 = vmatpush2.xpose.msra.mxu0 0.0
    %1881 = vmatprep.subr.mxu0 0.0
    %1882 = vmatpush2.xpose.msra.mxu0 0.0
    %1883 = vmatprep.subr.mxu0 0.0
    %1884 = vmatpush2.xpose.msra.mxu0 0.0
    %1885 = vmatprep.subr.mxu0 0.0
    %1886 = vmatpush2.xpose.msra.mxu0 0.0
    %1887 = vmatprep.subr.mxu0 0.0
    %1888 = vmatpush2.xpose.msra.mxu0 0.0
    %1889 = vmatprep.subr.mxu0 0.0
    %1890 = vmatpush2.xpose.msra.mxu0 0.0
    %1891 = vmatprep.subr.mxu0 0.0
    %1892 = vmatpush2.xpose.msra.mxu0 0.0
    %1893 = vmatprep.subr.mxu0 0.0
    %1894 = vmatpush2.xpose.msra.mxu0 0.0
    %1895 = vmatprep.subr.mxu0 0.0
    %1896 = vmatpush2.xpose.msra.mxu0 0.0
    %1897 = vmatprep.subr.mxu0 0.0
    %1898 = vmatpush2.xpose.msra.mxu0 0.0
    %1899 = vmatprep.subr.mxu0 0.0
    %1900 = vmatpush2.xpose.msra.mxu0 0.0
    %1901 = vmatprep.subr.mxu0 0.0
    %1902 = vmatpush2.xpose.msra.mxu0 0.0
    %1903 = vmatprep.mubr.f32.mxu0 0.0
    %1904 = vmatmul.mubr.f32.gmra.mxu0 %v1837
    %v1905 = vpop.f32.mrf.mxu0
    %v1906 = vadd.f32 0.0, %v1905
    %v1907 = vpop.f32.mrf.mxu0
    %1908 = vdwg.mxu0
    %v1909 = vrot.slane %v573, 4
    %1911 = vmatprep.subr.mxu0 0.0
    %1912 = vmatpush1.xpose.msra.mxu0 0.0
    %1913 = vmatprep.subr.mxu0 0.0
    %1914 = vmatpush1.xpose.msra.mxu0 0.0
    %1915 = vmatprep.subr.mxu0 0.0
    %1916 = vmatpush1.xpose.msra.mxu0 0.0
    %1917 = vmatprep.subr.mxu0 0.0
    %1918 = vmatpush1.xpose.msra.mxu0 0.0
    %1919 = vmatprep.subr.mxu0 0.0
    %1920 = vmatpush1.xpose.msra.mxu0 0.0
    %1921 = vmatprep.subr.mxu0 0.0
    %1922 = vmatpush1.xpose.msra.mxu0 0.0
    %1923 = vmatprep.subr.mxu0 0.0
    %1924 = vmatpush1.xpose.msra.mxu0 0.0
    %1925 = vmatprep.subr.mxu0 0.0
    %1926 = vmatpush1.xpose.msra.mxu0 0.0
    %1927 = vmatprep.subr.mxu0 0.0
    %1928 = vmatpush1.xpose.msra.mxu0 0.0
    %1929 = vmatprep.subr.mxu0 0.0
    %1930 = vmatpush1.xpose.msra.mxu0 0.0
    %1931 = vmatprep.subr.mxu0 0.0
    %1932 = vmatpush1.xpose.msra.mxu0 0.0
    %1933 = vmatprep.subr.mxu0 0.0
    %1934 = vmatpush1.xpose.msra.mxu0 0.0
    %1935 = vmatprep.subr.mxu0 0.0
    %1936 = vmatpush1.xpose.msra.mxu0 0.0
    %1937 = vmatprep.subr.mxu0 0.0
    %1938 = vmatpush1.xpose.msra.mxu0 0.0
    %1939 = vmatprep.subr.mxu0 0.0
    %1940 = vmatpush1.xpose.msra.mxu0 %v874
    %1941 = vmatprep.subr.mxu0 0.0
    %1942 = vmatpush1.xpose.msra.mxu0 %v873
    %1943 = vmatprep.subr.mxu0 0.0
    %1944 = vmatpush2.xpose.msra.mxu0 0.0
    %1945 = vmatprep.subr.mxu0 0.0
    %1946 = vmatpush2.xpose.msra.mxu0 0.0
    %1947 = vmatprep.subr.mxu0 0.0
    %1948 = vmatpush2.xpose.msra.mxu0 0.0
    %1949 = vmatprep.subr.mxu0 0.0
    %1950 = vmatpush2.xpose.msra.mxu0 0.0
    %1951 = vmatprep.subr.mxu0 0.0
    %1952 = vmatpush2.xpose.msra.mxu0 0.0
    %1953 = vmatprep.subr.mxu0 0.0
    %1954 = vmatpush2.xpose.msra.mxu0 0.0
    %1955 = vmatprep.subr.mxu0 0.0
    %1956 = vmatpush2.xpose.msra.mxu0 0.0
    %1957 = vmatprep.subr.mxu0 0.0
    %1958 = vmatpush2.xpose.msra.mxu0 0.0
    %1959 = vmatprep.subr.mxu0 0.0
    %1960 = vmatpush2.xpose.msra.mxu0 0.0
    %1961 = vmatprep.subr.mxu0 0.0
    %1962 = vmatpush2.xpose.msra.mxu0 0.0
    %1963 = vmatprep.subr.mxu0 0.0
    %1964 = vmatpush2.xpose.msra.mxu0 0.0
    %1965 = vmatprep.subr.mxu0 0.0
    %1966 = vmatpush2.xpose.msra.mxu0 0.0
    %1967 = vmatprep.subr.mxu0 0.0
    %1968 = vmatpush2.xpose.msra.mxu0 0.0
    %1969 = vmatprep.subr.mxu0 0.0
    %1970 = vmatpush2.xpose.msra.mxu0 0.0
    %1971 = vmatprep.subr.mxu0 0.0
    %1972 = vmatpush2.xpose.msra.mxu0 0.0
    %1973 = vmatprep.subr.mxu0 0.0
    %1974 = vmatpush2.xpose.msra.mxu0 0.0
    %1975 = vmatprep.mubr.f32.mxu0 0.0
    %1976 = vmatmul.mubr.f32.gmra.mxu0 %v1909
    %v1977 = vpop.f32.mrf.mxu0
    %v1978 = vadd.f32 0.0, %v1977
    %v1979 = vpop.f32.mrf.mxu0
    %1980 = vdwg.mxu0
    %v1981 = vrot.slane %v573, 5
    %1983 = vmatprep.subr.mxu0 0.0
    %1984 = vmatpush1.xpose.msra.mxu0 0.0
    %1985 = vmatprep.subr.mxu0 0.0
    %1986 = vmatpush1.xpose.msra.mxu0 0.0
    %1987 = vmatprep.subr.mxu0 0.0
    %1988 = vmatpush1.xpose.msra.mxu0 0.0
    %1989 = vmatprep.subr.mxu0 0.0
    %1990 = vmatpush1.xpose.msra.mxu0 0.0
    %1991 = vmatprep.subr.mxu0 0.0
    %1992 = vmatpush1.xpose.msra.mxu0 0.0
    %1993 = vmatprep.subr.mxu0 0.0
    %1994 = vmatpush1.xpose.msra.mxu0 0.0
    %1995 = vmatprep.subr.mxu0 0.0
    %1996 = vmatpush1.xpose.msra.mxu0 0.0
    %1997 = vmatprep.subr.mxu0 0.0
    %1998 = vmatpush1.xpose.msra.mxu0 0.0
    %1999 = vmatprep.subr.mxu0 0.0
    %2000 = vmatpush1.xpose.msra.mxu0 0.0
    %2001 = vmatprep.subr.mxu0 0.0
    %2002 = vmatpush1.xpose.msra.mxu0 0.0
    %2003 = vmatprep.subr.mxu0 0.0
    %2004 = vmatpush1.xpose.msra.mxu0 0.0
    %2005 = vmatprep.subr.mxu0 0.0
    %2006 = vmatpush1.xpose.msra.mxu0 0.0
    %2007 = vmatprep.subr.mxu0 0.0
    %2008 = vmatpush1.xpose.msra.mxu0 0.0
    %2009 = vmatprep.subr.mxu0 0.0
    %2010 = vmatpush1.xpose.msra.mxu0 0.0
    %2011 = vmatprep.subr.mxu0 0.0
    %2012 = vmatpush1.xpose.msra.mxu0 %v949
    %2013 = vmatprep.subr.mxu0 0.0
    %2014 = vmatpush1.xpose.msra.mxu0 %v948
    %2015 = vmatprep.subr.mxu0 0.0
    %2016 = vmatpush2.xpose.msra.mxu0 0.0
    %2017 = vmatprep.subr.mxu0 0.0
    %2018 = vmatpush2.xpose.msra.mxu0 0.0
    %2019 = vmatprep.subr.mxu0 0.0
    %2020 = vmatpush2.xpose.msra.mxu0 0.0
    %2021 = vmatprep.subr.mxu0 0.0
    %2022 = vmatpush2.xpose.msra.mxu0 0.0
    %2023 = vmatprep.subr.mxu0 0.0
    %2024 = vmatpush2.xpose.msra.mxu0 0.0
    %2025 = vmatprep.subr.mxu0 0.0
    %2026 = vmatpush2.xpose.msra.mxu0 0.0
    %2027 = vmatprep.subr.mxu0 0.0
    %2028 = vmatpush2.xpose.msra.mxu0 0.0
    %2029 = vmatprep.subr.mxu0 0.0
    %2030 = vmatpush2.xpose.msra.mxu0 0.0
    %2031 = vmatprep.subr.mxu0 0.0
    %2032 = vmatpush2.xpose.msra.mxu0 0.0
    %2033 = vmatprep.subr.mxu0 0.0
    %2034 = vmatpush2.xpose.msra.mxu0 0.0
    %2035 = vmatprep.subr.mxu0 0.0
    %2036 = vmatpush2.xpose.msra.mxu0 0.0
    %2037 = vmatprep.subr.mxu0 0.0
    %2038 = vmatpush2.xpose.msra.mxu0 0.0
    %2039 = vmatprep.subr.mxu0 0.0
    %2040 = vmatpush2.xpose.msra.mxu0 0.0
    %2041 = vmatprep.subr.mxu0 0.0
    %2042 = vmatpush2.xpose.msra.mxu0 0.0
    %2043 = vmatprep.subr.mxu0 0.0
    %2044 = vmatpush2.xpose.msra.mxu0 0.0
    %2045 = vmatprep.subr.mxu0 0.0
    %2046 = vmatpush2.xpose.msra.mxu0 0.0
    %2047 = vmatprep.mubr.f32.mxu0 0.0
    %2048 = vmatmul.mubr.f32.gmra.mxu0 %v1981
    %v2049 = vpop.f32.mrf.mxu0
    %v2050 = vadd.f32 0.0, %v2049
    %v2051 = vpop.f32.mrf.mxu0
    %2052 = vdwg.mxu0
    %v2053 = vrot.slane %v573, 6
    %2055 = vmatprep.subr.mxu0 0.0
    %2056 = vmatpush1.xpose.msra.mxu0 0.0
    %2057 = vmatprep.subr.mxu0 0.0
    %2058 = vmatpush1.xpose.msra.mxu0 0.0
    %2059 = vmatprep.subr.mxu0 0.0
    %2060 = vmatpush1.xpose.msra.mxu0 0.0
    %2061 = vmatprep.subr.mxu0 0.0
    %2062 = vmatpush1.xpose.msra.mxu0 0.0
    %2063 = vmatprep.subr.mxu0 0.0
    %2064 = vmatpush1.xpose.msra.mxu0 0.0
    %2065 = vmatprep.subr.mxu0 0.0
    %2066 = vmatpush1.xpose.msra.mxu0 0.0
    %2067 = vmatprep.subr.mxu0 0.0
    %2068 = vmatpush1.xpose.msra.mxu0 0.0
    %2069 = vmatprep.subr.mxu0 0.0
    %2070 = vmatpush1.xpose.msra.mxu0 0.0
    %2071 = vmatprep.subr.mxu0 0.0
    %2072 = vmatpush1.xpose.msra.mxu0 0.0
    %2073 = vmatprep.subr.mxu0 0.0
    %2074 = vmatpush1.xpose.msra.mxu0 0.0
    %2075 = vmatprep.subr.mxu0 0.0
    %2076 = vmatpush1.xpose.msra.mxu0 0.0
    %2077 = vmatprep.subr.mxu0 0.0
    %2078 = vmatpush1.xpose.msra.mxu0 0.0
    %2079 = vmatprep.subr.mxu0 0.0
    %2080 = vmatpush1.xpose.msra.mxu0 0.0
    %2081 = vmatprep.subr.mxu0 0.0
    %2082 = vmatpush1.xpose.msra.mxu0 0.0
    %2083 = vmatprep.subr.mxu0 0.0
    %2084 = vmatpush1.xpose.msra.mxu0 %v1024
    %2085 = vmatprep.subr.mxu0 0.0
    %2086 = vmatpush1.xpose.msra.mxu0 %v1023
    %2087 = vmatprep.subr.mxu0 0.0
    %2088 = vmatpush2.xpose.msra.mxu0 0.0
    %2089 = vmatprep.subr.mxu0 0.0
    %2090 = vmatpush2.xpose.msra.mxu0 0.0
    %2091 = vmatprep.subr.mxu0 0.0
    %2092 = vmatpush2.xpose.msra.mxu0 0.0
    %2093 = vmatprep.subr.mxu0 0.0
    %2094 = vmatpush2.xpose.msra.mxu0 0.0
    %2095 = vmatprep.subr.mxu0 0.0
    %2096 = vmatpush2.xpose.msra.mxu0 0.0
    %2097 = vmatprep.subr.mxu0 0.0
    %2098 = vmatpush2.xpose.msra.mxu0 0.0
    %2099 = vmatprep.subr.mxu0 0.0
    %2100 = vmatpush2.xpose.msra.mxu0 0.0
    %2101 = vmatprep.subr.mxu0 0.0
    %2102 = vmatpush2.xpose.msra.mxu0 0.0
    %2103 = vmatprep.subr.mxu0 0.0
    %2104 = vmatpush2.xpose.msra.mxu0 0.0
    %2105 = vmatprep.subr.mxu0 0.0
    %2106 = vmatpush2.xpose.msra.mxu0 0.0
    %2107 = vmatprep.subr.mxu0 0.0
    %2108 = vmatpush2.xpose.msra.mxu0 0.0
    %2109 = vmatprep.subr.mxu0 0.0
    %2110 = vmatpush2.xpose.msra.mxu0 0.0
    %2111 = vmatprep.subr.mxu0 0.0
    %2112 = vmatpush2.xpose.msra.mxu0 0.0
    %2113 = vmatprep.subr.mxu0 0.0
    %2114 = vmatpush2.xpose.msra.mxu0 0.0
    %2115 = vmatprep.subr.mxu0 0.0
    %2116 = vmatpush2.xpose.msra.mxu0 0.0
    %2117 = vmatprep.subr.mxu0 0.0
    %2118 = vmatpush2.xpose.msra.mxu0 0.0
    %2119 = vmatprep.mubr.f32.mxu0 0.0
    %2120 = vmatmul.mubr.f32.gmra.mxu0 %v2053
    %v2121 = vpop.f32.mrf.mxu0
    %v2122 = vadd.f32 0.0, %v2121
    %v2123 = vpop.f32.mrf.mxu0
    %2124 = vdwg.mxu0
    %v2125 = vrot.slane %v573, 7
    %2127 = vmatprep.subr.mxu0 0.0
    %2128 = vmatpush1.xpose.msra.mxu0 0.0
    %2129 = vmatprep.subr.mxu0 0.0
    %2130 = vmatpush1.xpose.msra.mxu0 0.0
    %2131 = vmatprep.subr.mxu0 0.0
    %2132 = vmatpush1.xpose.msra.mxu0 0.0
    %2133 = vmatprep.subr.mxu0 0.0
    %2134 = vmatpush1.xpose.msra.mxu0 0.0
    %2135 = vmatprep.subr.mxu0 0.0
    %2136 = vmatpush1.xpose.msra.mxu0 0.0
    %2137 = vmatprep.subr.mxu0 0.0
    %2138 = vmatpush1.xpose.msra.mxu0 0.0
    %2139 = vmatprep.subr.mxu0 0.0
    %2140 = vmatpush1.xpose.msra.mxu0 0.0
    %2141 = vmatprep.subr.mxu0 0.0
    %2142 = vmatpush1.xpose.msra.mxu0 0.0
    %2143 = vmatprep.subr.mxu0 0.0
    %2144 = vmatpush1.xpose.msra.mxu0 0.0
    %2145 = vmatprep.subr.mxu0 0.0
    %2146 = vmatpush1.xpose.msra.mxu0 0.0
    %2147 = vmatprep.subr.mxu0 0.0
    %2148 = vmatpush1.xpose.msra.mxu0 0.0
    %2149 = vmatprep.subr.mxu0 0.0
    %2150 = vmatpush1.xpose.msra.mxu0 0.0
    %2151 = vmatprep.subr.mxu0 0.0
    %2152 = vmatpush1.xpose.msra.mxu0 0.0
    %2153 = vmatprep.subr.mxu0 0.0
    %2154 = vmatpush1.xpose.msra.mxu0 0.0
    %2155 = vmatprep.subr.mxu0 0.0
    %2156 = vmatpush1.xpose.msra.mxu0 %v1099
    %2157 = vmatprep.subr.mxu0 0.0
    %2158 = vmatpush1.xpose.msra.mxu0 %v1098
    %2159 = vmatprep.subr.mxu0 0.0
    %2160 = vmatpush2.xpose.msra.mxu0 0.0
    %2161 = vmatprep.subr.mxu0 0.0
    %2162 = vmatpush2.xpose.msra.mxu0 0.0
    %2163 = vmatprep.subr.mxu0 0.0
    %2164 = vmatpush2.xpose.msra.mxu0 0.0
    %2165 = vmatprep.subr.mxu0 0.0
    %2166 = vmatpush2.xpose.msra.mxu0 0.0
    %2167 = vmatprep.subr.mxu0 0.0
    %2168 = vmatpush2.xpose.msra.mxu0 0.0
    %2169 = vmatprep.subr.mxu0 0.0
    %2170 = vmatpush2.xpose.msra.mxu0 0.0
    %2171 = vmatprep.subr.mxu0 0.0
    %2172 = vmatpush2.xpose.msra.mxu0 0.0
    %2173 = vmatprep.subr.mxu0 0.0
    %2174 = vmatpush2.xpose.msra.mxu0 0.0
    %2175 = vmatprep.subr.mxu0 0.0
    %2176 = vmatpush2.xpose.msra.mxu0 0.0
    %2177 = vmatprep.subr.mxu0 0.0
    %2178 = vmatpush2.xpose.msra.mxu0 0.0
    %2179 = vmatprep.subr.mxu0 0.0
    %2180 = vmatpush2.xpose.msra.mxu0 0.0
    %2181 = vmatprep.subr.mxu0 0.0
    %2182 = vmatpush2.xpose.msra.mxu0 0.0
    %2183 = vmatprep.subr.mxu0 0.0
    %2184 = vmatpush2.xpose.msra.mxu0 0.0
    %2185 = vmatprep.subr.mxu0 0.0
    %2186 = vmatpush2.xpose.msra.mxu0 0.0
    %2187 = vmatprep.subr.mxu0 0.0
    %2188 = vmatpush2.xpose.msra.mxu0 0.0
    %2189 = vmatprep.subr.mxu0 0.0
    %2190 = vmatpush2.xpose.msra.mxu0 0.0
    %2191 = vmatprep.mubr.f32.mxu0 0.0
    %2192 = vmatmul.mubr.f32.gmra.mxu0 %v2125
    %v2193 = vpop.f32.mrf.mxu0
    %v2194 = vadd.f32 0.0, %v2193
    %v2195 = vpop.f32.mrf.mxu0
    %2196 = vdwg.mxu0
    %v2198 = vrot.slane %v1762, 7
    %v2201 = vrot.slane %v1834, 6
    %v2204 = vrot.slane %v1906, 5
    %v2207 = vrot.slane %v1978, 4
    %v2210 = vrot.slane %v2050, 3
    %v2213 = vrot.slane %v2122, 2
    %v2216 = vrot.slane %v2194, 1
    %v2218 = vsel %vm1193, %v1689, %v2198
    %v2219 = vsel %vm1195, %v2218, %v2201
    %v2220 = vsel %vm1197, %v2219, %v2204
    %v2221 = vsel %vm1199, %v2220, %v2207
    %v2222 = vsel %vm1201, %v2221, %v2210
    %v2223 = vsel %vm1203, %v2222, %v2213
    %v2224 = vsel %vm1205, %v2223, %v2216
    %2225 = vmatprep.subr.mxu0 0.0
    %2226 = vmatpush1.msra.mxu0 0.0
    %2227 = vmatprep.subr.mxu0 0.0
    %2228 = vmatpush1.msra.mxu0 0.0
    %2229 = vmatprep.subr.mxu0 0.0
    %2230 = vmatpush1.msra.mxu0 0.0
    %2231 = vmatprep.subr.mxu0 0.0
    %2232 = vmatpush1.msra.mxu0 0.0
    %2233 = vmatprep.subr.mxu0 0.0
    %2234 = vmatpush1.msra.mxu0 0.0
    %2235 = vmatprep.subr.mxu0 0.0
    %2236 = vmatpush1.msra.mxu0 0.0
    %2237 = vmatprep.subr.mxu0 0.0
    %2238 = vmatpush1.msra.mxu0 0.0
    %2239 = vmatprep.subr.mxu0 0.0
    %2240 = vmatpush1.msra.mxu0 0.0
    %2241 = vmatprep.subr.mxu0 0.0
    %2242 = vmatpush1.msra.mxu0 0.0
    %2243 = vmatprep.subr.mxu0 0.0
    %2244 = vmatpush1.msra.mxu0 0.0
    %2245 = vmatprep.subr.mxu0 0.0
    %2246 = vmatpush1.msra.mxu0 0.0
    %2247 = vmatprep.subr.mxu0 0.0
    %2248 = vmatpush1.msra.mxu0 0.0
    %2249 = vmatprep.subr.mxu0 0.0
    %2250 = vmatpush1.msra.mxu0 0.0
    %2251 = vmatprep.subr.mxu0 0.0
    %2252 = vmatpush1.msra.mxu0 0.0
    %2253 = vmatprep.subr.mxu0 0.0
    %2254 = vmatpush1.msra.mxu0 0.0
    %2255 = vmatprep.subr.mxu0 0.0
    %2256 = vmatpush1.msra.mxu0 %v2224
    %2257 = vmatprep.subr.mxu0 0.0
    %2258 = vmatpush2.msra.mxu0 0.0
    %2259 = vmatprep.subr.mxu0 0.0
    %2260 = vmatpush2.msra.mxu0 0.0
    %2261 = vmatprep.subr.mxu0 0.0
    %2262 = vmatpush2.msra.mxu0 0.0
    %2263 = vmatprep.subr.mxu0 0.0
    %2264 = vmatpush2.msra.mxu0 0.0
    %2265 = vmatprep.subr.mxu0 0.0
    %2266 = vmatpush2.msra.mxu0 0.0
    %2267 = vmatprep.subr.mxu0 0.0
    %2268 = vmatpush2.msra.mxu0 0.0
    %2269 = vmatprep.subr.mxu0 0.0
    %2270 = vmatpush2.msra.mxu0 0.0
    %2271 = vmatprep.subr.mxu0 0.0
    %2272 = vmatpush2.msra.mxu0 0.0
    %2273 = vmatprep.subr.mxu0 0.0
    %2274 = vmatpush2.msra.mxu0 0.0
    %2275 = vmatprep.subr.mxu0 0.0
    %2276 = vmatpush2.msra.mxu0 0.0
    %2277 = vmatprep.subr.mxu0 0.0
    %2278 = vmatpush2.msra.mxu0 0.0
    %2279 = vmatprep.subr.mxu0 0.0
    %2280 = vmatpush2.msra.mxu0 0.0
    %2281 = vmatprep.subr.mxu0 0.0
    %2282 = vmatpush2.msra.mxu0 0.0
    %2283 = vmatprep.subr.mxu0 0.0
    %2284 = vmatpush2.msra.mxu0 0.0
    %2285 = vmatprep.subr.mxu0 0.0
    %2286 = vmatpush2.msra.mxu0 0.0
    %2287 = vmatprep.subr.mxu0 0.0
    %2288 = vmatpush2.msra.mxu0 0.0
    %2289 = vmatprep.mubr.f32.mxu0 0.0
    %2290 = vmatmul.mubr.f32.gmra.mxu0 %v1215
    %v2291 = vpop.f32.mrf.mxu0
    %v2292 = vadd.f32 %v1210, %v2291
    %v2293 = vpop.f32.mrf.mxu0
    %2294 = vdwg.mxu0
    %vm2295 = vcmp.gt.f32.partialorder %v2292, 0.0
    %v2296 = vmin.f32 %v2292, 0.0
    %v2297 = vmul.f32 %v2296, 1.442695
    %v2298 = vpow.pop %v2297
    %v2299 = vsub.f32 %v2298, 1.0
    %v2300 = vsel %vm2295, %v2292, %v2299
    %v2302 = vsel %vm1294, %v2300, 0
    %2304 = vmatprep.subr.mxu0 0.0
    %2305 = vmatpush1.xpose.msra.mxu0 0.0
    %2306 = vmatprep.subr.mxu0 0.0
    %2307 = vmatpush1.xpose.msra.mxu0 0.0
    %2308 = vmatprep.subr.mxu0 0.0
    %2309 = vmatpush1.xpose.msra.mxu0 0.0
    %2310 = vmatprep.subr.mxu0 0.0
    %2311 = vmatpush1.xpose.msra.mxu0 0.0
    %2312 = vmatprep.subr.mxu0 0.0
    %2313 = vmatpush1.xpose.msra.mxu0 0.0
    %2314 = vmatprep.subr.mxu0 0.0
    %2315 = vmatpush1.xpose.msra.mxu0 0.0
    %2316 = vmatprep.subr.mxu0 0.0
    %2317 = vmatpush1.xpose.msra.mxu0 0.0
    %2318 = vmatprep.subr.mxu0 0.0
    %2319 = vmatpush1.xpose.msra.mxu0 0.0
    %2320 = vmatprep.subr.mxu0 0.0
    %2321 = vmatpush1.xpose.msra.mxu0 0.0
    %2322 = vmatprep.subr.mxu0 0.0
    %2323 = vmatpush1.xpose.msra.mxu0 0.0
    %2324 = vmatprep.subr.mxu0 0.0
    %2325 = vmatpush1.xpose.msra.mxu0 0.0
    %2326 = vmatprep.subr.mxu0 0.0
    %2327 = vmatpush1.xpose.msra.mxu0 0.0
    %2328 = vmatprep.subr.mxu0 0.0
    %2329 = vmatpush1.xpose.msra.mxu0 0.0
    %2330 = vmatprep.subr.mxu0 0.0
    %2331 = vmatpush1.xpose.msra.mxu0 0.0
    %2332 = vmatprep.subr.mxu0 0.0
    %2333 = vmatpush1.xpose.msra.mxu0 0.0
    %2334 = vmatprep.subr.mxu0 0.0
    %2335 = vmatpush1.xpose.msra.mxu0 %v1299
    %2336 = vmatprep.subr.mxu0 0.0
    %2337 = vmatpush2.xpose.msra.mxu0 0.0
    %2338 = vmatprep.subr.mxu0 0.0
    %2339 = vmatpush2.xpose.msra.mxu0 0.0
    %2340 = vmatprep.subr.mxu0 0.0
    %2341 = vmatpush2.xpose.msra.mxu0 0.0
    %2342 = vmatprep.subr.mxu0 0.0
    %2343 = vmatpush2.xpose.msra.mxu0 0.0
    %2344 = vmatprep.subr.mxu0 0.0
    %2345 = vmatpush2.xpose.msra.mxu0 0.0
    %2346 = vmatprep.subr.mxu0 0.0
    %2347 = vmatpush2.xpose.msra.mxu0 0.0
    %2348 = vmatprep.subr.mxu0 0.0
    %2349 = vmatpush2.xpose.msra.mxu0 0.0
    %2350 = vmatprep.subr.mxu0 0.0
    %2351 = vmatpush2.xpose.msra.mxu0 0.0
    %2352 = vmatprep.subr.mxu0 0.0
    %2353 = vmatpush2.xpose.msra.mxu0 0.0
    %2354 = vmatprep.subr.mxu0 0.0
    %2355 = vmatpush2.xpose.msra.mxu0 0.0
    %2356 = vmatprep.subr.mxu0 0.0
    %2357 = vmatpush2.xpose.msra.mxu0 0.0
    %2358 = vmatprep.subr.mxu0 0.0
    %2359 = vmatpush2.xpose.msra.mxu0 0.0
    %2360 = vmatprep.subr.mxu0 0.0
    %2361 = vmatpush2.xpose.msra.mxu0 0.0
    %2362 = vmatprep.subr.mxu0 0.0
    %2363 = vmatpush2.xpose.msra.mxu0 0.0
    %2364 = vmatprep.subr.mxu0 0.0
    %2365 = vmatpush2.xpose.msra.mxu0 0.0
    %2366 = vmatprep.subr.mxu0 0.0
    %2367 = vmatpush2.xpose.msra.mxu0 0.0
    %2368 = vmatprep.mubr.f32.mxu0 0.0
    %2369 = vmatmul.mubr.f32.gmra.mxu0 %v2302
    %v2370 = vpop.f32.mrf.mxu0
    %v2371 = vadd.f32 0.0, %v2370
    %v2372 = vpop.f32.mrf.mxu0
    %2373 = vdwg.mxu0
    %2375 = vrot.lane.b32.xlu0 %v2371, 10
    %v2376 = vpop.permute.xlu0 %2375
    %v2378 = vadd.f32 %v74, %v2376
    %v2379 = vrot.slane %v2300, 1
    %v2380 = vsel %vm1294, %v2379, 0
    %2382 = vmatprep.subr.mxu0 0.0
    %2383 = vmatpush1.xpose.msra.mxu0 0.0
    %2384 = vmatprep.subr.mxu0 0.0
    %2385 = vmatpush1.xpose.msra.mxu0 0.0
    %2386 = vmatprep.subr.mxu0 0.0
    %2387 = vmatpush1.xpose.msra.mxu0 0.0
    %2388 = vmatprep.subr.mxu0 0.0
    %2389 = vmatpush1.xpose.msra.mxu0 0.0
    %2390 = vmatprep.subr.mxu0 0.0
    %2391 = vmatpush1.xpose.msra.mxu0 0.0
    %2392 = vmatprep.subr.mxu0 0.0
    %2393 = vmatpush1.xpose.msra.mxu0 0.0
    %2394 = vmatprep.subr.mxu0 0.0
    %2395 = vmatpush1.xpose.msra.mxu0 0.0
    %2396 = vmatprep.subr.mxu0 0.0
    %2397 = vmatpush1.xpose.msra.mxu0 0.0
    %2398 = vmatprep.subr.mxu0 0.0
    %2399 = vmatpush1.xpose.msra.mxu0 0.0
    %2400 = vmatprep.subr.mxu0 0.0
    %2401 = vmatpush1.xpose.msra.mxu0 0.0
    %2402 = vmatprep.subr.mxu0 0.0
    %2403 = vmatpush1.xpose.msra.mxu0 0.0
    %2404 = vmatprep.subr.mxu0 0.0
    %2405 = vmatpush1.xpose.msra.mxu0 0.0
    %2406 = vmatprep.subr.mxu0 0.0
    %2407 = vmatpush1.xpose.msra.mxu0 0.0
    %2408 = vmatprep.subr.mxu0 0.0
    %2409 = vmatpush1.xpose.msra.mxu0 0.0
    %2410 = vmatprep.subr.mxu0 0.0
    %2411 = vmatpush1.xpose.msra.mxu0 0.0
    %2412 = vmatprep.subr.mxu0 0.0
    %2413 = vmatpush1.xpose.msra.mxu0 %v1381
    %2414 = vmatprep.subr.mxu0 0.0
    %2415 = vmatpush2.xpose.msra.mxu0 0.0
    %2416 = vmatprep.subr.mxu0 0.0
    %2417 = vmatpush2.xpose.msra.mxu0 0.0
    %2418 = vmatprep.subr.mxu0 0.0
    %2419 = vmatpush2.xpose.msra.mxu0 0.0
    %2420 = vmatprep.subr.mxu0 0.0
    %2421 = vmatpush2.xpose.msra.mxu0 0.0
    %2422 = vmatprep.subr.mxu0 0.0
    %2423 = vmatpush2.xpose.msra.mxu0 0.0
    %2424 = vmatprep.subr.mxu0 0.0
    %2425 = vmatpush2.xpose.msra.mxu0 0.0
    %2426 = vmatprep.subr.mxu0 0.0
    %2427 = vmatpush2.xpose.msra.mxu0 0.0
    %2428 = vmatprep.subr.mxu0 0.0
    %2429 = vmatpush2.xpose.msra.mxu0 0.0
    %2430 = vmatprep.subr.mxu0 0.0
    %2431 = vmatpush2.xpose.msra.mxu0 0.0
    %2432 = vmatprep.subr.mxu0 0.0
    %2433 = vmatpush2.xpose.msra.mxu0 0.0
    %2434 = vmatprep.subr.mxu0 0.0
    %2435 = vmatpush2.xpose.msra.mxu0 0.0
    %2436 = vmatprep.subr.mxu0 0.0
    %2437 = vmatpush2.xpose.msra.mxu0 0.0
    %2438 = vmatprep.subr.mxu0 0.0
    %2439 = vmatpush2.xpose.msra.mxu0 0.0
    %2440 = vmatprep.subr.mxu0 0.0
    %2441 = vmatpush2.xpose.msra.mxu0 0.0
    %2442 = vmatprep.subr.mxu0 0.0
    %2443 = vmatpush2.xpose.msra.mxu0 0.0
    %2444 = vmatprep.subr.mxu0 0.0
    %2445 = vmatpush2.xpose.msra.mxu0 0.0
    %2446 = vmatprep.mubr.f32.mxu0 0.0
    %2447 = vmatmul.mubr.f32.gmra.mxu0 %v2380
    %v2448 = vpop.f32.mrf.mxu0
    %v2449 = vadd.f32 0.0, %v2448
    %v2450 = vpop.f32.mrf.mxu0
    %2451 = vdwg.mxu0
    %2453 = vrot.lane.b32.xlu0 %v2449, 10
    %v2454 = vpop.permute.xlu0 %2453
    %v2456 = vadd.f32 %v2378, %v2454
    %v2457 = vrot.slane %v2300, 2
    %v2458 = vsel %vm1294, %v2457, 0
    %2460 = vmatprep.subr.mxu0 0.0
    %2461 = vmatpush1.xpose.msra.mxu0 0.0
    %2462 = vmatprep.subr.mxu0 0.0
    %2463 = vmatpush1.xpose.msra.mxu0 0.0
    %2464 = vmatprep.subr.mxu0 0.0
    %2465 = vmatpush1.xpose.msra.mxu0 0.0
    %2466 = vmatprep.subr.mxu0 0.0
    %2467 = vmatpush1.xpose.msra.mxu0 0.0
    %2468 = vmatprep.subr.mxu0 0.0
    %2469 = vmatpush1.xpose.msra.mxu0 0.0
    %2470 = vmatprep.subr.mxu0 0.0
    %2471 = vmatpush1.xpose.msra.mxu0 0.0
    %2472 = vmatprep.subr.mxu0 0.0
    %2473 = vmatpush1.xpose.msra.mxu0 0.0
    %2474 = vmatprep.subr.mxu0 0.0
    %2475 = vmatpush1.xpose.msra.mxu0 0.0
    %2476 = vmatprep.subr.mxu0 0.0
    %2477 = vmatpush1.xpose.msra.mxu0 0.0
    %2478 = vmatprep.subr.mxu0 0.0
    %2479 = vmatpush1.xpose.msra.mxu0 0.0
    %2480 = vmatprep.subr.mxu0 0.0
    %2481 = vmatpush1.xpose.msra.mxu0 0.0
    %2482 = vmatprep.subr.mxu0 0.0
    %2483 = vmatpush1.xpose.msra.mxu0 0.0
    %2484 = vmatprep.subr.mxu0 0.0
    %2485 = vmatpush1.xpose.msra.mxu0 0.0
    %2486 = vmatprep.subr.mxu0 0.0
    %2487 = vmatpush1.xpose.msra.mxu0 0.0
    %2488 = vmatprep.subr.mxu0 0.0
    %2489 = vmatpush1.xpose.msra.mxu0 0.0
    %2490 = vmatprep.subr.mxu0 0.0
    %2491 = vmatpush1.xpose.msra.mxu0 %v1463
    %2492 = vmatprep.subr.mxu0 0.0
    %2493 = vmatpush2.xpose.msra.mxu0 0.0
    %2494 = vmatprep.subr.mxu0 0.0
    %2495 = vmatpush2.xpose.msra.mxu0 0.0
    %2496 = vmatprep.subr.mxu0 0.0
    %2497 = vmatpush2.xpose.msra.mxu0 0.0
    %2498 = vmatprep.subr.mxu0 0.0
    %2499 = vmatpush2.xpose.msra.mxu0 0.0
    %2500 = vmatprep.subr.mxu0 0.0
    %2501 = vmatpush2.xpose.msra.mxu0 0.0
    %2502 = vmatprep.subr.mxu0 0.0
    %2503 = vmatpush2.xpose.msra.mxu0 0.0
    %2504 = vmatprep.subr.mxu0 0.0
    %2505 = vmatpush2.xpose.msra.mxu0 0.0
    %2506 = vmatprep.subr.mxu0 0.0
    %2507 = vmatpush2.xpose.msra.mxu0 0.0
    %2508 = vmatprep.subr.mxu0 0.0
    %2509 = vmatpush2.xpose.msra.mxu0 0.0
    %2510 = vmatprep.subr.mxu0 0.0
    %2511 = vmatpush2.xpose.msra.mxu0 0.0
    %2512 = vmatprep.subr.mxu0 0.0
    %2513 = vmatpush2.xpose.msra.mxu0 0.0
    %2514 = vmatprep.subr.mxu0 0.0
    %2515 = vmatpush2.xpose.msra.mxu0 0.0
    %2516 = vmatprep.subr.mxu0 0.0
    %2517 = vmatpush2.xpose.msra.mxu0 0.0
    %2518 = vmatprep.subr.mxu0 0.0
    %2519 = vmatpush2.xpose.msra.mxu0 0.0
    %2520 = vmatprep.subr.mxu0 0.0
    %2521 = vmatpush2.xpose.msra.mxu0 0.0
    %2522 = vmatprep.subr.mxu0 0.0
    %2523 = vmatpush2.xpose.msra.mxu0 0.0
    %2524 = vmatprep.mubr.f32.mxu0 0.0
    %2525 = vmatmul.mubr.f32.gmra.mxu0 %v2458
    %v2526 = vpop.f32.mrf.mxu0
    %v2527 = vadd.f32 0.0, %v2526
    %v2528 = vpop.f32.mrf.mxu0
    %2529 = vdwg.mxu0
    %2531 = vrot.lane.b32.xlu0 %v2527, 10
    %v2532 = vpop.permute.xlu0 %2531
    %v2534 = vadd.f32 %v2456, %v2532
    %v2535 = vrot.slane %v2300, 3
    %v2536 = vsel %vm1294, %v2535, 0
    %2538 = vmatprep.subr.mxu0 0.0
    %2539 = vmatpush1.xpose.msra.mxu0 0.0
    %2540 = vmatprep.subr.mxu0 0.0
    %2541 = vmatpush1.xpose.msra.mxu0 0.0
    %2542 = vmatprep.subr.mxu0 0.0
    %2543 = vmatpush1.xpose.msra.mxu0 0.0
    %2544 = vmatprep.subr.mxu0 0.0
    %2545 = vmatpush1.xpose.msra.mxu0 0.0
    %2546 = vmatprep.subr.mxu0 0.0
    %2547 = vmatpush1.xpose.msra.mxu0 0.0
    %2548 = vmatprep.subr.mxu0 0.0
    %2549 = vmatpush1.xpose.msra.mxu0 0.0
    %2550 = vmatprep.subr.mxu0 0.0
    %2551 = vmatpush1.xpose.msra.mxu0 0.0
    %2552 = vmatprep.subr.mxu0 0.0
    %2553 = vmatpush1.xpose.msra.mxu0 0.0
    %2554 = vmatprep.subr.mxu0 0.0
    %2555 = vmatpush1.xpose.msra.mxu0 0.0
    %2556 = vmatprep.subr.mxu0 0.0
    %2557 = vmatpush1.xpose.msra.mxu0 0.0
    %2558 = vmatprep.subr.mxu0 0.0
    %2559 = vmatpush1.xpose.msra.mxu0 0.0
    %2560 = vmatprep.subr.mxu0 0.0
    %2561 = vmatpush1.xpose.msra.mxu0 0.0
    %2562 = vmatprep.subr.mxu0 0.0
    %2563 = vmatpush1.xpose.msra.mxu0 0.0
    %2564 = vmatprep.subr.mxu0 0.0
    %2565 = vmatpush1.xpose.msra.mxu0 0.0
    %2566 = vmatprep.subr.mxu0 0.0
    %2567 = vmatpush1.xpose.msra.mxu0 0.0
    %2568 = vmatprep.subr.mxu0 0.0
    %2569 = vmatpush1.xpose.msra.mxu0 %v1545
    %2570 = vmatprep.subr.mxu0 0.0
    %2571 = vmatpush2.xpose.msra.mxu0 0.0
    %2572 = vmatprep.subr.mxu0 0.0
    %2573 = vmatpush2.xpose.msra.mxu0 0.0
    %2574 = vmatprep.subr.mxu0 0.0
    %2575 = vmatpush2.xpose.msra.mxu0 0.0
    %2576 = vmatprep.subr.mxu0 0.0
    %2577 = vmatpush2.xpose.msra.mxu0 0.0
    %2578 = vmatprep.subr.mxu0 0.0
    %2579 = vmatpush2.xpose.msra.mxu0 0.0
    %2580 = vmatprep.subr.mxu0 0.0
    %2581 = vmatpush2.xpose.msra.mxu0 0.0
    %2582 = vmatprep.subr.mxu0 0.0
    %2583 = vmatpush2.xpose.msra.mxu0 0.0
    %2584 = vmatprep.subr.mxu0 0.0
    %2585 = vmatpush2.xpose.msra.mxu0 0.0
    %2586 = vmatprep.subr.mxu0 0.0
    %2587 = vmatpush2.xpose.msra.mxu0 0.0
    %2588 = vmatprep.subr.mxu0 0.0
    %2589 = vmatpush2.xpose.msra.mxu0 0.0
    %2590 = vmatprep.subr.mxu0 0.0
    %2591 = vmatpush2.xpose.msra.mxu0 0.0
    %2592 = vmatprep.subr.mxu0 0.0
    %2593 = vmatpush2.xpose.msra.mxu0 0.0
    %2594 = vmatprep.subr.mxu0 0.0
    %2595 = vmatpush2.xpose.msra.mxu0 0.0
    %2596 = vmatprep.subr.mxu0 0.0
    %2597 = vmatpush2.xpose.msra.mxu0 0.0
    %2598 = vmatprep.subr.mxu0 0.0
    %2599 = vmatpush2.xpose.msra.mxu0 0.0
    %2600 = vmatprep.subr.mxu0 0.0
    %2601 = vmatpush2.xpose.msra.mxu0 0.0
    %2602 = vmatprep.mubr.f32.mxu0 0.0
    %2603 = vmatmul.mubr.f32.gmra.mxu0 %v2536
    %v2604 = vpop.f32.mrf.mxu0
    %v2605 = vadd.f32 0.0, %v2604
    %v2606 = vpop.f32.mrf.mxu0
    %2607 = vdwg.mxu0
    %2609 = vrot.lane.b32.xlu0 %v2605, 10
    %v2610 = vpop.permute.xlu0 %2609
    %v2612 = vadd.f32 %v2534, %v2610
    %v2614 = vrot.slane %v2612, 7
    %v2616 = vsel %vm1193, %v1621, %v2614
    %2618 = vrot.lane.b32.xlu0 %v2616, 118
    %v2619 = vpop.permute.xlu0 %2618
    %vm2621 = vcmask 25600
    %2622 = vst.msk [vmem:[#allocation10] sm:$0x3] %vm2621, %v2619
    // Predicated region
    $region38: #{tpu_custom_call.1} parent=1 // pred_check
      _
    $region39: #{tpu_custom_call.1} parent=1 // pred_check_branch
      %2624 = sbr.rel (0) target = $region41
    $region40: #{tpu_custom_call.1} parent=1 // pred_region
      %s2626 = ssub.s32 32, 32
      %2627 = vsyncadd [#allocation4], %s2626
      %s2629 = sshll.u32 [#allocation10], 4
      %s2630 = int_to_ptr.vmem [resolvable:$true] %s2629
      %2632 = dma.vmem_to_hbm [thread:$0]  %s2630, 32, %s5, [#allocation4]
    $region41: #{tpu_custom_call.1} parent=1 // pred_fallthru
      _
    // Predicated region
    $region42: #{tpu_custom_call.1} parent=1 // pred_check
      _
    $region43: #{tpu_custom_call.1} parent=1 // pred_check_branch
      %2634 = sbr.rel (0) target = $region45
    $region44: #{tpu_custom_call.1} parent=1 // pred_region
      %2635 = dma.done [#allocation4], 32
    $region45: #{tpu_custom_call.1} parent=1 // pred_fallthru
      _
    %2636 = vsyncpa [#allocation3], 1
    %2637 = vsyncpa [#allocation6], 1
    %2638 = vsyncpa [#allocation9], 1
    %2639 = vsyncpa [#allocation4], 1

</llo_original>
